<compile_context>
chip_gen: v6e
topology: v6e:2x2x1
jax: 0.10.0
libtpu: 0.0.40
codegen_flags: <defaults>
</compile_context>

<pallas_src>
import functools

import jax
import jax.numpy as jnp
from jax import lax
from jax.experimental import pallas as pl
from jax.experimental.pallas import tpu as pltpu


def _gcn_align_kernel(out0_ref, adj_ref, maskr_ref, maskc_ref,
                      wg_ref, gamma_ref, beta_ref, wa_ref, ba_ref,
                      o_ref, *, K, ln_eps, bt, d_real, d_pad):
    cdt = adj_ref.dtype                            # MXU input dtype (bf16 by default)
    S = adj_ref.shape[1]
    inv_d = 1.0 / float(d_real)                    # LayerNorm statistics over the REAL dim
    pad_cnt = float(d_pad - d_real)

    gamma = gamma_ref[...]                         # (1, Dp) f32, zero-padded
    beta = beta_ref[...]
    ba = ba_ref[...]
    wg = wg_ref[...]                               # (Dp, Dp) in compute dtype
    wa = wa_ref[...]

    # hete-derived init row -> (S, Dp); hoisted out of the batch-block loop (single sublane bcast).
    x0 = jnp.broadcast_to(out0_ref[...], (S, d_pad))

    for b in range(bt):                            # static, unrolled batch-block loop
        adj = adj_ref[b]                           # (S, S), 1/(deg+1) already folded in (host)
        x = x0                                     # (S, Dp) f32

        # K GCN propagation steps (eval mode: dropout = identity; module bias=False).
        for _ in range(K):
            res = x
            xc = x.astype(cdt)
            teout = jnp.dot(xc, wg, preferred_element_type=jnp.float32)            # (S, Dp)
            agg = jnp.dot(adj, teout.astype(cdt), preferred_element_type=jnp.float32)
            h = jnp.maximum(agg, 0.0)              # relu; degree scaling folded into adj
            # LayerNorm over the real D columns: padded columns of h are exactly zero, so the
            # sums only need the pad-count correction on the centered second moment.
            mu = jnp.sum(h, axis=-1, keepdims=True) * inv_d
            hc = h - mu
            var = (jnp.sum(hc * hc, axis=-1, keepdims=True) - pad_cnt * mu * mu) * inv_d
            x = hc * lax.rsqrt(var + ln_eps) * gamma + beta + res                  # LN + residual

        # selfalignment(x, x, textmask), eval mode (align bias=True).
        xc = x.astype(cdt)
        x_lin = jnp.dot(xc, wa, preferred_element_type=jnp.float32)                # (S, Dp)
        # logits = x_lin @ x.T without materializing a transpose (contract last dims of both).
        logits = lax.dot_general(x_lin.astype(cdt), xc, (((1,), (1,)), ((), ())),
                                 preferred_element_type=jnp.float32)               # (S, S)
        logits = logits + (1.0 - maskr_ref[b]) * (-1e20)                           # key mask
        m = jnp.max(logits, axis=-1, keepdims=True)
        e = jnp.exp(logits - m)
        attn = e * pl.reciprocal(jnp.sum(e, axis=-1, keepdims=True), approx=True)
        aligned = jnp.dot(attn.astype(cdt), xc, preferred_element_type=jnp.float32)
        aligned = aligned * maskc_ref[b] + ba                                      # query mask + bias

        # Two lane-aligned half-stores into the (S, 2*Dp) output block: the feature concat is
        # done directly in the output layout (no wrapper transpose pass).
        o_ref[b, :, 0:d_pad] = aligned.astype(o_ref.dtype)
        o_ref[b, :, d_pad:2 * d_pad] = x.astype(o_ref.dtype)


def _round_up(x, m):
    return (x + m - 1) // m * m


def _largest_divisor_leq(n, cap):
    for d in range(min(n, cap), 0, -1):
        if n % d == 0:
            return d
    return 1


def simple_graph_convolution_alignment(text, adj1, adj2, edge1, edge2, textmask, hete,
                                       params, *, K=4, compute_dtype=jnp.bfloat16,
                                       max_batch_block=8,
                                       vmem_limit_bytes=64 * 1024 * 1024):
    """Pallas port of simpleGraphConvolutionalignment.forward (eval mode, module bias=False).

    Returns (outs, attss) like the PyTorch module: outs is (B, S, 2*out_features),
    attss is [adj1, adj2] passed through unchanged.
    """
    B, S, _ = text.shape
    D = params["w_gcn"].shape[0]
    Dp = _round_up(D, 128)                       # lane-dense (padded) feature dim
    Bt = _largest_divisor_leq(B, max_batch_block)  # batch elements per grid step

    # adj = adj1 + adj2 ; adj[adj >= 1] = 1, with 1/(row_degree+1) folded in once on the host
    # (valid since denom > 0 and relu(c*x) = c*relu(x)).  Shipped in the MXU compute dtype:
    # the bf16 rounding of the fold is row-uniform, which LayerNorm cancels exactly.
    adj = adj1 + adj2
    adj = jnp.where(adj >= 1.0, 1.0, adj)
    inv_denom = 1.0 / (jnp.sum(adj, axis=-1, keepdims=True) + 1.0)
    adj_scaled = (adj * inv_denom).astype(compute_dtype)

    # NOTE: edge = edge_vocab(edge1 + edge2) is dead code in the reference forward (it never
    # affects the returned values), so the embedding lookup is skipped here.
    del edge1, edge2

    # Initial node state from hete: mean over dim 0 -> a single (1, Dp) row (broadcast to
    # (S, Dp) once inside the kernel instead of materializing/DMAing the full tile).
    out0 = jnp.zeros((1, Dp), jnp.float32).at[0, :D].set(jnp.mean(hete[0], axis=0))

    mask_row = textmask.reshape(B, 1, S).astype(jnp.float32)   # softmax key-mask layout
    mask_col = textmask.reshape(B, S, 1).astype(jnp.float32)   # output row-mask layout

    def pad_mat(w):    # nn.Linear weight (D, D): transpose (x @ W.T) and zero-pad to (Dp, Dp)
        return jnp.zeros((Dp, Dp), jnp.float32).at[:D, :D].set(w.T).astype(compute_dtype)

    def pad_vec(v):    # (D,) -> zero-padded (1, Dp) f32
        return jnp.zeros((1, Dp), jnp.float32).at[0, :D].set(v)

    wg_t = pad_mat(params["w_gcn"])
    wa_t = pad_mat(params["w_align"])
    gamma = pad_vec(params["ln_gamma"])
    beta = pad_vec(params["ln_beta"])
    ba = pad_vec(params["b_align"])

    kernel = functools.partial(_gcn_align_kernel, K=K, ln_eps=1e-5, bt=Bt,
                               d_real=D, d_pad=Dp)

    def const_spec(shape):   # batch-invariant operands: DMA'd once, stay VMEM-resident
        return pl.BlockSpec(shape, lambda g: (0,) * len(shape))

    res = pl.pallas_call(
        kernel,
        out_shape=jax.ShapeDtypeStruct((B, S, 2 * Dp), jnp.float32),
        grid=(B // Bt,),
        in_specs=[
            const_spec((1, Dp)),                               # hete-derived init row
            pl.BlockSpec((Bt, S, S), lambda g: (g, 0, 0)),     # degree-scaled adj (compute dtype)
            pl.BlockSpec((Bt, 1, S), lambda g: (g, 0, 0)),     # textmask (row layout)
            pl.BlockSpec((Bt, S, 1), lambda g: (g, 0, 0)),     # textmask (col layout)
            const_spec((Dp, Dp)),                              # GCN linear weight^T
            const_spec((1, Dp)),                               # LayerNorm gamma
            const_spec((1, Dp)),                               # LayerNorm beta
            const_spec((Dp, Dp)),                              # align linear weight^T
            const_spec((1, Dp)),                               # align bias
        ],
        out_specs=pl.BlockSpec((Bt, S, 2 * Dp), lambda g: (g, 0, 0)),
        compiler_params=pltpu.CompilerParams(
            dimension_semantics=("parallel",),
            vmem_limit_bytes=vmem_limit_bytes),
    )(out0, adj_scaled, mask_row, mask_col, wg_t, gamma, beta, wa_t, ba)

    if Dp == D:
        outs = res                                             # already (B, S, 2*D), lane-dense
    else:
        outs = jnp.concatenate([res[:, :, :D], res[:, :, Dp:Dp + D]], axis=-1)
    return outs, [adj1, adj2]


def _reference(text, adj1, adj2, textmask, hete, params, *, K=4, eps=1e-5,
               mxu_dtype=jnp.float32):
    """Pure-JAX replica of the PyTorch forward (eval mode, module bias=False).

    With mxu_dtype=bfloat16 it also mirrors the kernel's MXU-input quantization points so the
    bf16 kernel path can be checked against matching quantization.
    """
    B, S, _ = text.shape
    D = params["w_gcn"].shape[0]
    c = lambda a: a.astype(mxu_dtype)

    adj = adj1 + adj2
    adj = jnp.where(adj >= 1.0, 1.0, adj)
    inv_denom = 1.0 / (jnp.sum(adj, axis=2, keepdims=True) + 1.0)
    adj_s = c(adj * inv_denom)
    wg = c(params["w_gcn"].T)
    wa = c(params["w_align"].T)
    gamma, beta = params["ln_gamma"], params["ln_beta"]

    out0 = jnp.mean(hete[0], axis=0)
    x = jnp.broadcast_to(out0, (B, S, D)).astype(jnp.float32)
    for _ in range(K):
        res = x
        teout = jnp.einsum("bsd,de->bse", c(x), wg, preferred_element_type=jnp.float32)
        agg = jnp.einsum("bij,bjd->bid", adj_s, c(teout), preferred_element_type=jnp.float32)
        h = jax.nn.relu(agg)
        mu = jnp.mean(h, axis=-1, keepdims=True)
        var = jnp.mean((h - mu) ** 2, axis=-1, keepdims=True)
        x = (h - mu) * jax.lax.rsqrt(var + eps) * gamma + beta + res
    x_lin = jnp.einsum("bsd,de->bse", c(x), wa, preferred_element_type=jnp.float32)
    logits = jnp.einsum("bsd,btd->bst", c(x_lin), c(x), preferred_element_type=jnp.float32)
    logits = logits + (1.0 - textmask[:, None, :]) * (-1e20)
    attn = jax.nn.softmax(logits, axis=-1)
    al = jnp.einsum("bst,btd->bsd", c(attn), c(x), preferred_element_type=jnp.float32)
    al = al * textmask[:, :, None] + params["b_align"]
    return jnp.concatenate([al, x], axis=-1), [adj1, adj2]


if __name__ == "__main__":
    B, S, Din, D, K = 2, 8, 16, 32, 4
    n_hete = 3
    keys = jax.random.split(jax.random.PRNGKey(0), 12)

    bound = 1.0 / (D ** 0.5)
    params = {
        "w_gcn": jax.random.uniform(keys[0], (D, D), jnp.float32, -bound, bound),
        "w_align": jax.random.uniform(keys[1], (D, D), jnp.float32, -bound, bound),
        "b_align": jax.random.uniform(keys[2], (D,), jnp.float32, -bound, bound),
        "ln_gamma": jax.random.uniform(keys[3], (D,), jnp.float32, 0.5, 1.5),
        "ln_beta": jax.random.uniform(keys[4], (D,), jnp.float32, -0.5, 0.5),
    }

    text = jax.random.normal(keys[5], (B, S, Din), jnp.float32)    # only its shape is used
    adj1 = (jax.random.uniform(keys[6], (B, S, S)) > 0.5).astype(jnp.float32)
    adj2 = (jax.random.uniform(keys[7], (B, S, S)) > 0.5).astype(jnp.float32)
    edge1 = jax.random.randint(keys[8], (B, S, S), 0, 3)
    edge2 = jax.random.randint(keys[9], (B, S, S), 0, 3)
    hete = [jax.random.normal(keys[10], (n_hete, D), jnp.float32)]
    textmask = jnp.ones((B, S), jnp.float32).at[1, 5:].set(0.0)

    # 1) Default bf16-MXU path, checked against a reference that mirrors the MXU-input
    #    quantization points (relative-Frobenius check: bf16 quantization noise is amplified
    #    through K LayerNorm+residual steps, so element-wise parity is not expected).
    outs_bf16, attss = simple_graph_convolution_alignment(
        text, adj1, adj2, edge1, edge2, textmask, hete, params, K=K)
    outs_bf16 = jax.block_until_ready(outs_bf16)
    assert outs_bf16.shape == (B, S, 2 * D)
    assert len(attss) == 2
    assert bool(jnp.all(jnp.isfinite(outs_bf16)))
    ref_bf16, _ = _reference(text, adj1, adj2, textmask, hete, params, K=K,
                             mxu_dtype=jnp.bfloat16)
    rel = float(jnp.sqrt(jnp.sum((outs_bf16 - ref_bf16) ** 2))
                / jnp.sqrt(jnp.sum(ref_bf16 ** 2)))
    assert rel < 0.05, f"bf16 path relative Frobenius error {rel}"

    # 2) f32-MXU path, checked tightly against the pure-f32 reference (exact semantics).
    outs_f32, _ = simple_graph_convolution_alignment(
        text, adj1, adj2, edge1, edge2, textmask, hete, params, K=K,
        compute_dtype=jnp.float32)
    outs_f32 = jax.block_until_ready(outs_f32)
    ref_f32, _ = _reference(text, adj1, adj2, textmask, hete, params, K=K)
    err = float(jnp.max(jnp.abs(outs_f32 - ref_f32)))
    assert jnp.allclose(outs_f32, ref_f32, atol=5e-3, rtol=5e-3), f"f32 max abs err {err}"

    print("KERNEL_OK")
</pallas_src>

<mosaic_0001>
module attributes {stable_mosaic.version = 11 : i64} {
  func.func @_gcn_align_kernel(%arg0: i32, %arg1: memref<1x128xf32, #tpu.memory_space<vmem>>, %arg2: memref<2x8x8xbf16, #tpu.memory_space<vmem>>, %arg3: memref<2x1x8xf32, #tpu.memory_space<vmem>>, %arg4: memref<2x8x1xf32, #tpu.memory_space<vmem>>, %arg5: memref<128x128xbf16, #tpu.memory_space<vmem>>, %arg6: memref<1x128xf32, #tpu.memory_space<vmem>>, %arg7: memref<1x128xf32, #tpu.memory_space<vmem>>, %arg8: memref<128x128xbf16, #tpu.memory_space<vmem>>, %arg9: memref<1x128xf32, #tpu.memory_space<vmem>>, %arg10: memref<2x8x256xf32, #tpu.memory_space<vmem>>) attributes {dimension_semantics = [#tpu.dimension_semantics<parallel>], iteration_bounds = array<i64: 1>, scalar_prefetch = 0 : i64, scratch_operands = 0 : i64, tpu.core_type = #tpu.core_type<tc>, window_params = [{pipeline_mode = #tpu.pipeline_mode<synchronous>, transform_indices = @transform_0, window_bounds = array<i64: 1, 128>}, {transform_indices = @transform_1, window_bounds = array<i64: 2, 8, 8>}, {transform_indices = @transform_2, window_bounds = array<i64: 2, 1, 8>}, {transform_indices = @transform_3, window_bounds = array<i64: 2, 8, 1>}, {pipeline_mode = #tpu.pipeline_mode<synchronous>, transform_indices = @transform_4, window_bounds = array<i64: 128, 128>}, {pipeline_mode = #tpu.pipeline_mode<synchronous>, transform_indices = @transform_5, window_bounds = array<i64: 1, 128>}, {pipeline_mode = #tpu.pipeline_mode<synchronous>, transform_indices = @transform_6, window_bounds = array<i64: 1, 128>}, {pipeline_mode = #tpu.pipeline_mode<synchronous>, transform_indices = @transform_7, window_bounds = array<i64: 128, 128>}, {pipeline_mode = #tpu.pipeline_mode<synchronous>, transform_indices = @transform_8, window_bounds = array<i64: 1, 128>}, {transform_indices = @transform_9, window_bounds = array<i64: 2, 8, 256>}]} {
    %c0 = arith.constant 0 : index
    %c0_0 = arith.constant 0 : index
    %0 = vector.load %arg6[%c0, %c0_0] : memref<1x128xf32, #tpu.memory_space<vmem>>, vector<1x128xf32>
    %c0_1 = arith.constant 0 : index
    %c0_2 = arith.constant 0 : index
    %1 = vector.load %arg7[%c0_1, %c0_2] : memref<1x128xf32, #tpu.memory_space<vmem>>, vector<1x128xf32>
    %c0_3 = arith.constant 0 : index
    %c0_4 = arith.constant 0 : index
    %2 = vector.load %arg9[%c0_3, %c0_4] : memref<1x128xf32, #tpu.memory_space<vmem>>, vector<1x128xf32>
    %c0_5 = arith.constant 0 : index
    %c0_6 = arith.constant 0 : index
    %3 = vector.load %arg5[%c0_5, %c0_6] : memref<128x128xbf16, #tpu.memory_space<vmem>>, vector<128x128xbf16>
    %c0_7 = arith.constant 0 : index
    %c0_8 = arith.constant 0 : index
    %4 = vector.load %arg8[%c0_7, %c0_8] : memref<128x128xbf16, #tpu.memory_space<vmem>>, vector<128x128xbf16>
    %c0_9 = arith.constant 0 : index
    %c0_10 = arith.constant 0 : index
    %5 = vector.load %arg1[%c0_9, %c0_10] : memref<1x128xf32, #tpu.memory_space<vmem>>, vector<1x128xf32>
    %6 = vector.shape_cast %5 : vector<1x128xf32> to vector<1x128xf32>
    %7 = vector.broadcast %6 : vector<1x128xf32> to vector<8x128xf32>
    %c0_11 = arith.constant 0 : index
    %c0_12 = arith.constant 0 : index
    %c0_13 = arith.constant 0 : index
    %8 = vector.load %arg2[%c0_11, %c0_12, %c0_13] : memref<2x8x8xbf16, #tpu.memory_space<vmem>>, vector<1x8x8xbf16>
    %9 = vector.shape_cast %8 : vector<1x8x8xbf16> to vector<8x8xbf16>
    %10 = arith.truncf %7 : vector<8x128xf32> to vector<8x128xbf16>
    %cst = arith.constant dense<0.000000e+00> : vector<8x128xf32>
    %11 = tpu.matmul %10, %3, %cst {dimension_numbers = #tpu.dot_dimension_numbers<[1], [0], [0], [1], [0, 0, 1, 1], [], []>} : vector<8x128xbf16>, vector<128x128xbf16>, vector<8x128xf32> -> vector<8x128xf32>
    %12 = arith.truncf %11 : vector<8x128xf32> to vector<8x128xbf16>
    %cst_14 = arith.constant dense<0.000000e+00> : vector<8x128xf32>
    %13 = tpu.matmul %9, %12, %cst_14 {dimension_numbers = #tpu.dot_dimension_numbers<[1], [0], [0], [1], [0, 0, 1, 1], [], []>} : vector<8x8xbf16>, vector<8x128xbf16>, vector<8x128xf32> -> vector<8x128xf32>
    %cst_15 = arith.constant 0.000000e+00 : f32
    %14 = vector.broadcast %cst_15 : f32 to vector<8x128xf32>
    %15 = arith.maximumf %13, %14 : vector<8x128xf32>
    %cst_16 = arith.constant dense<0.000000e+00> : vector<8xf32>
    %16 = vector.multi_reduction <add>, %15, %cst_16 [1] : vector<8x128xf32> to vector<8xf32>
    %17 = vector.shape_cast %16 : vector<8xf32> to vector<8x1xf32>
    %cst_17 = arith.constant 3.125000e-02 : f32
    %18 = vector.broadcast %cst_17 : f32 to vector<8x1xf32>
    %19 = arith.mulf %17, %18 : vector<8x1xf32>
    %20 = vector.broadcast %19 : vector<8x1xf32> to vector<8x128xf32>
    %21 = arith.subf %15, %20 : vector<8x128xf32>
    %22 = arith.mulf %21, %21 : vector<8x128xf32>
    %cst_18 = arith.constant dense<0.000000e+00> : vector<8xf32>
    %23 = vector.multi_reduction <add>, %22, %cst_18 [1] : vector<8x128xf32> to vector<8xf32>
    %24 = vector.shape_cast %23 : vector<8xf32> to vector<8x1xf32>
    %cst_19 = arith.constant 9.600000e+01 : f32
    %25 = vector.broadcast %cst_19 : f32 to vector<8x1xf32>
    %26 = arith.mulf %25, %19 : vector<8x1xf32>
    %27 = arith.mulf %26, %19 : vector<8x1xf32>
    %28 = arith.subf %24, %27 : vector<8x1xf32>
    %cst_20 = arith.constant 3.125000e-02 : f32
    %29 = vector.broadcast %cst_20 : f32 to vector<8x1xf32>
    %30 = arith.mulf %28, %29 : vector<8x1xf32>
    %cst_21 = arith.constant 9.99999974E-6 : f32
    %31 = vector.broadcast %cst_21 : f32 to vector<8x1xf32>
    %32 = arith.addf %30, %31 : vector<8x1xf32>
    %33 = math.rsqrt %32 : vector<8x1xf32>
    %34 = vector.broadcast %33 : vector<8x1xf32> to vector<8x128xf32>
    %35 = arith.mulf %21, %34 : vector<8x128xf32>
    %36 = vector.broadcast %0 : vector<1x128xf32> to vector<8x128xf32>
    %37 = arith.mulf %35, %36 : vector<8x128xf32>
    %38 = vector.broadcast %1 : vector<1x128xf32> to vector<8x128xf32>
    %39 = arith.addf %37, %38 : vector<8x128xf32>
    %40 = arith.addf %39, %7 : vector<8x128xf32>
    %41 = arith.truncf %40 : vector<8x128xf32> to vector<8x128xbf16>
    %cst_22 = arith.constant dense<0.000000e+00> : vector<8x128xf32>
    %42 = tpu.matmul %41, %3, %cst_22 {dimension_numbers = #tpu.dot_dimension_numbers<[1], [0], [0], [1], [0, 0, 1, 1], [], []>} : vector<8x128xbf16>, vector<128x128xbf16>, vector<8x128xf32> -> vector<8x128xf32>
    %43 = arith.truncf %42 : vector<8x128xf32> to vector<8x128xbf16>
    %cst_23 = arith.constant dense<0.000000e+00> : vector<8x128xf32>
    %44 = tpu.matmul %9, %43, %cst_23 {dimension_numbers = #tpu.dot_dimension_numbers<[1], [0], [0], [1], [0, 0, 1, 1], [], []>} : vector<8x8xbf16>, vector<8x128xbf16>, vector<8x128xf32> -> vector<8x128xf32>
    %cst_24 = arith.constant 0.000000e+00 : f32
    %45 = vector.broadcast %cst_24 : f32 to vector<8x128xf32>
    %46 = arith.maximumf %44, %45 : vector<8x128xf32>
    %cst_25 = arith.constant dense<0.000000e+00> : vector<8xf32>
    %47 = vector.multi_reduction <add>, %46, %cst_25 [1] : vector<8x128xf32> to vector<8xf32>
    %48 = vector.shape_cast %47 : vector<8xf32> to vector<8x1xf32>
    %cst_26 = arith.constant 3.125000e-02 : f32
    %49 = vector.broadcast %cst_26 : f32 to vector<8x1xf32>
    %50 = arith.mulf %48, %49 : vector<8x1xf32>
    %51 = vector.broadcast %50 : vector<8x1xf32> to vector<8x128xf32>
    %52 = arith.subf %46, %51 : vector<8x128xf32>
    %53 = arith.mulf %52, %52 : vector<8x128xf32>
    %cst_27 = arith.constant dense<0.000000e+00> : vector<8xf32>
    %54 = vector.multi_reduction <add>, %53, %cst_27 [1] : vector<8x128xf32> to vector<8xf32>
    %55 = vector.shape_cast %54 : vector<8xf32> to vector<8x1xf32>
    %cst_28 = arith.constant 9.600000e+01 : f32
    %56 = vector.broadcast %cst_28 : f32 to vector<8x1xf32>
    %57 = arith.mulf %56, %50 : vector<8x1xf32>
    %58 = arith.mulf %57, %50 : vector<8x1xf32>
    %59 = arith.subf %55, %58 : vector<8x1xf32>
    %cst_29 = arith.constant 3.125000e-02 : f32
    %60 = vector.broadcast %cst_29 : f32 to vector<8x1xf32>
    %61 = arith.mulf %59, %60 : vector<8x1xf32>
    %cst_30 = arith.constant 9.99999974E-6 : f32
    %62 = vector.broadcast %cst_30 : f32 to vector<8x1xf32>
    %63 = arith.addf %61, %62 : vector<8x1xf32>
    %64 = math.rsqrt %63 : vector<8x1xf32>
    %65 = vector.broadcast %64 : vector<8x1xf32> to vector<8x128xf32>
    %66 = arith.mulf %52, %65 : vector<8x128xf32>
    %67 = vector.broadcast %0 : vector<1x128xf32> to vector<8x128xf32>
    %68 = arith.mulf %66, %67 : vector<8x128xf32>
    %69 = vector.broadcast %1 : vector<1x128xf32> to vector<8x128xf32>
    %70 = arith.addf %68, %69 : vector<8x128xf32>
    %71 = arith.addf %70, %40 : vector<8x128xf32>
    %72 = arith.truncf %71 : vector<8x128xf32> to vector<8x128xbf16>
    %cst_31 = arith.constant dense<0.000000e+00> : vector<8x128xf32>
    %73 = tpu.matmul %72, %3, %cst_31 {dimension_numbers = #tpu.dot_dimension_numbers<[1], [0], [0], [1], [0, 0, 1, 1], [], []>} : vector<8x128xbf16>, vector<128x128xbf16>, vector<8x128xf32> -> vector<8x128xf32>
    %74 = arith.truncf %73 : vector<8x128xf32> to vector<8x128xbf16>
    %cst_32 = arith.constant dense<0.000000e+00> : vector<8x128xf32>
    %75 = tpu.matmul %9, %74, %cst_32 {dimension_numbers = #tpu.dot_dimension_numbers<[1], [0], [0], [1], [0, 0, 1, 1], [], []>} : vector<8x8xbf16>, vector<8x128xbf16>, vector<8x128xf32> -> vector<8x128xf32>
    %cst_33 = arith.constant 0.000000e+00 : f32
    %76 = vector.broadcast %cst_33 : f32 to vector<8x128xf32>
    %77 = arith.maximumf %75, %76 : vector<8x128xf32>
    %cst_34 = arith.constant dense<0.000000e+00> : vector<8xf32>
    %78 = vector.multi_reduction <add>, %77, %cst_34 [1] : vector<8x128xf32> to vector<8xf32>
    %79 = vector.shape_cast %78 : vector<8xf32> to vector<8x1xf32>
    %cst_35 = arith.constant 3.125000e-02 : f32
    %80 = vector.broadcast %cst_35 : f32 to vector<8x1xf32>
    %81 = arith.mulf %79, %80 : vector<8x1xf32>
    %82 = vector.broadcast %81 : vector<8x1xf32> to vector<8x128xf32>
    %83 = arith.subf %77, %82 : vector<8x128xf32>
    %84 = arith.mulf %83, %83 : vector<8x128xf32>
    %cst_36 = arith.constant dense<0.000000e+00> : vector<8xf32>
    %85 = vector.multi_reduction <add>, %84, %cst_36 [1] : vector<8x128xf32> to vector<8xf32>
    %86 = vector.shape_cast %85 : vector<8xf32> to vector<8x1xf32>
    %cst_37 = arith.constant 9.600000e+01 : f32
    %87 = vector.broadcast %cst_37 : f32 to vector<8x1xf32>
    %88 = arith.mulf %87, %81 : vector<8x1xf32>
    %89 = arith.mulf %88, %81 : vector<8x1xf32>
    %90 = arith.subf %86, %89 : vector<8x1xf32>
    %cst_38 = arith.constant 3.125000e-02 : f32
    %91 = vector.broadcast %cst_38 : f32 to vector<8x1xf32>
    %92 = arith.mulf %90, %91 : vector<8x1xf32>
    %cst_39 = arith.constant 9.99999974E-6 : f32
    %93 = vector.broadcast %cst_39 : f32 to vector<8x1xf32>
    %94 = arith.addf %92, %93 : vector<8x1xf32>
    %95 = math.rsqrt %94 : vector<8x1xf32>
    %96 = vector.broadcast %95 : vector<8x1xf32> to vector<8x128xf32>
    %97 = arith.mulf %83, %96 : vector<8x128xf32>
    %98 = vector.broadcast %0 : vector<1x128xf32> to vector<8x128xf32>
    %99 = arith.mulf %97, %98 : vector<8x128xf32>
    %100 = vector.broadcast %1 : vector<1x128xf32> to vector<8x128xf32>
    %101 = arith.addf %99, %100 : vector<8x128xf32>
    %102 = arith.addf %101, %71 : vector<8x128xf32>
    %103 = arith.truncf %102 : vector<8x128xf32> to vector<8x128xbf16>
    %cst_40 = arith.constant dense<0.000000e+00> : vector<8x128xf32>
    %104 = tpu.matmul %103, %3, %cst_40 {dimension_numbers = #tpu.dot_dimension_numbers<[1], [0], [0], [1], [0, 0, 1, 1], [], []>} : vector<8x128xbf16>, vector<128x128xbf16>, vector<8x128xf32> -> vector<8x128xf32>
    %105 = arith.truncf %104 : vector<8x128xf32> to vector<8x128xbf16>
    %cst_41 = arith.constant dense<0.000000e+00> : vector<8x128xf32>
    %106 = tpu.matmul %9, %105, %cst_41 {dimension_numbers = #tpu.dot_dimension_numbers<[1], [0], [0], [1], [0, 0, 1, 1], [], []>} : vector<8x8xbf16>, vector<8x128xbf16>, vector<8x128xf32> -> vector<8x128xf32>
    %cst_42 = arith.constant 0.000000e+00 : f32
    %107 = vector.broadcast %cst_42 : f32 to vector<8x128xf32>
    %108 = arith.maximumf %106, %107 : vector<8x128xf32>
    %cst_43 = arith.constant dense<0.000000e+00> : vector<8xf32>
    %109 = vector.multi_reduction <add>, %108, %cst_43 [1] : vector<8x128xf32> to vector<8xf32>
    %110 = vector.shape_cast %109 : vector<8xf32> to vector<8x1xf32>
    %cst_44 = arith.constant 3.125000e-02 : f32
    %111 = vector.broadcast %cst_44 : f32 to vector<8x1xf32>
    %112 = arith.mulf %110, %111 : vector<8x1xf32>
    %113 = vector.broadcast %112 : vector<8x1xf32> to vector<8x128xf32>
    %114 = arith.subf %108, %113 : vector<8x128xf32>
    %115 = arith.mulf %114, %114 : vector<8x128xf32>
    %cst_45 = arith.constant dense<0.000000e+00> : vector<8xf32>
    %116 = vector.multi_reduction <add>, %115, %cst_45 [1] : vector<8x128xf32> to vector<8xf32>
    %117 = vector.shape_cast %116 : vector<8xf32> to vector<8x1xf32>
    %cst_46 = arith.constant 9.600000e+01 : f32
    %118 = vector.broadcast %cst_46 : f32 to vector<8x1xf32>
    %119 = arith.mulf %118, %112 : vector<8x1xf32>
    %120 = arith.mulf %119, %112 : vector<8x1xf32>
    %121 = arith.subf %117, %120 : vector<8x1xf32>
    %cst_47 = arith.constant 3.125000e-02 : f32
    %122 = vector.broadcast %cst_47 : f32 to vector<8x1xf32>
    %123 = arith.mulf %121, %122 : vector<8x1xf32>
    %cst_48 = arith.constant 9.99999974E-6 : f32
    %124 = vector.broadcast %cst_48 : f32 to vector<8x1xf32>
    %125 = arith.addf %123, %124 : vector<8x1xf32>
    %126 = math.rsqrt %125 : vector<8x1xf32>
    %127 = vector.broadcast %126 : vector<8x1xf32> to vector<8x128xf32>
    %128 = arith.mulf %114, %127 : vector<8x128xf32>
    %129 = vector.broadcast %0 : vector<1x128xf32> to vector<8x128xf32>
    %130 = arith.mulf %128, %129 : vector<8x128xf32>
    %131 = vector.broadcast %1 : vector<1x128xf32> to vector<8x128xf32>
    %132 = arith.addf %130, %131 : vector<8x128xf32>
    %133 = arith.addf %132, %102 : vector<8x128xf32>
    %134 = arith.truncf %133 : vector<8x128xf32> to vector<8x128xbf16>
    %cst_49 = arith.constant dense<0.000000e+00> : vector<8x128xf32>
    %135 = tpu.matmul %134, %4, %cst_49 {dimension_numbers = #tpu.dot_dimension_numbers<[1], [0], [0], [1], [0, 0, 1, 1], [], []>} : vector<8x128xbf16>, vector<128x128xbf16>, vector<8x128xf32> -> vector<8x128xf32>
    %136 = arith.truncf %135 : vector<8x128xf32> to vector<8x128xbf16>
    %cst_50 = arith.constant dense<0.000000e+00> : vector<8x8xf32>
    %137 = tpu.matmul %136, %134, %cst_50 {dimension_numbers = #tpu.dot_dimension_numbers<[1], [1], [0], [0], [0, 0, 1, 0], [], []>} : vector<8x128xbf16>, vector<8x128xbf16>, vector<8x8xf32> -> vector<8x8xf32>
    %c0_51 = arith.constant 0 : index
    %c0_52 = arith.constant 0 : index
    %c0_53 = arith.constant 0 : index
    %138 = vector.load %arg3[%c0_51, %c0_52, %c0_53] : memref<2x1x8xf32, #tpu.memory_space<vmem>>, vector<1x1x8xf32>
    %139 = vector.shape_cast %138 : vector<1x1x8xf32> to vector<1x8xf32>
    %cst_54 = arith.constant 1.000000e+00 : f32
    %140 = vector.broadcast %cst_54 : f32 to vector<1x8xf32>
    %141 = arith.subf %140, %139 : vector<1x8xf32>
    %cst_55 = arith.constant -1.000000e+20 : f32
    %142 = vector.broadcast %cst_55 : f32 to vector<1x8xf32>
    %143 = arith.mulf %141, %142 : vector<1x8xf32>
    %144 = vector.broadcast %143 : vector<1x8xf32> to vector<8x8xf32>
    %145 = arith.addf %137, %144 : vector<8x8xf32>
    %cst_56 = arith.constant dense<0xFF800000> : vector<8xf32>
    %146 = vector.multi_reduction <maximumf>, %145, %cst_56 [1] : vector<8x8xf32> to vector<8xf32>
    %147 = vector.shape_cast %146 : vector<8xf32> to vector<8x1xf32>
    %148 = vector.broadcast %147 : vector<8x1xf32> to vector<8x8xf32>
    %149 = arith.subf %145, %148 : vector<8x8xf32>
    %150 = math.exp %149 : vector<8x8xf32>
    %cst_57 = arith.constant dense<0.000000e+00> : vector<8xf32>
    %151 = vector.multi_reduction <add>, %150, %cst_57 [1] : vector<8x8xf32> to vector<8xf32>
    %152 = vector.shape_cast %151 : vector<8xf32> to vector<8x1xf32>
    %153 = tpu.reciprocal %152 {approx = true} : vector<8x1xf32> -> vector<8x1xf32>
    %154 = vector.broadcast %153 : vector<8x1xf32> to vector<8x8xf32>
    %155 = arith.mulf %150, %154 : vector<8x8xf32>
    %156 = arith.truncf %155 : vector<8x8xf32> to vector<8x8xbf16>
    %cst_58 = arith.constant dense<0.000000e+00> : vector<8x128xf32>
    %157 = tpu.matmul %156, %134, %cst_58 {dimension_numbers = #tpu.dot_dimension_numbers<[1], [0], [0], [1], [0, 0, 1, 1], [], []>} : vector<8x8xbf16>, vector<8x128xbf16>, vector<8x128xf32> -> vector<8x128xf32>
    %c0_59 = arith.constant 0 : index
    %c0_60 = arith.constant 0 : index
    %c0_61 = arith.constant 0 : index
    %158 = vector.load %arg4[%c0_59, %c0_60, %c0_61] : memref<2x8x1xf32, #tpu.memory_space<vmem>>, vector<1x8x1xf32>
    %159 = vector.shape_cast %158 : vector<1x8x1xf32> to vector<8x1xf32>
    %160 = vector.broadcast %159 : vector<8x1xf32> to vector<8x128xf32>
    %161 = arith.mulf %157, %160 : vector<8x128xf32>
    %162 = vector.broadcast %2 : vector<1x128xf32> to vector<8x128xf32>
    %163 = arith.addf %161, %162 : vector<8x128xf32>
    %c0_62 = arith.constant 0 : index
    %c0_63 = arith.constant 0 : index
    %c0_64 = arith.constant 0 : index
    %164 = vector.load %arg10[%c0_62, %c0_63, %c0_64] : memref<2x8x256xf32, #tpu.memory_space<vmem>>, vector<1x8x128xf32>
    %165 = vector.shape_cast %164 : vector<1x8x128xf32> to vector<8x128xf32>
    %166 = vector.shape_cast %163 : vector<8x128xf32> to vector<1x8x128xf32>
    tpu.vector_store %arg10[%c0_62, %c0_63, %c0_64], %166 {strides = array<i32>} : memref<2x8x256xf32, #tpu.memory_space<vmem>>, vector<1x8x128xf32>,
    %c0_65 = arith.constant 0 : index
    %c0_66 = arith.constant 0 : index
    %c128 = arith.constant 128 : index
    %167 = vector.load %arg10[%c0_65, %c0_66, %c128] : memref<2x8x256xf32, #tpu.memory_space<vmem>>, vector<1x8x128xf32>
    %168 = vector.shape_cast %167 : vector<1x8x128xf32> to vector<8x128xf32>
    %169 = vector.shape_cast %133 : vector<8x128xf32> to vector<1x8x128xf32>
    tpu.vector_store %arg10[%c0_65, %c0_66, %c128], %169 {strides = array<i32>} : memref<2x8x256xf32, #tpu.memory_space<vmem>>, vector<1x8x128xf32>,
    %c1 = arith.constant 1 : index
    %c0_67 = arith.constant 0 : index
    %c0_68 = arith.constant 0 : index
    %170 = vector.load %arg2[%c1, %c0_67, %c0_68] : memref<2x8x8xbf16, #tpu.memory_space<vmem>>, vector<1x8x8xbf16>
    %171 = vector.shape_cast %170 : vector<1x8x8xbf16> to vector<8x8xbf16>
    %172 = arith.truncf %7 : vector<8x128xf32> to vector<8x128xbf16>
    %cst_69 = arith.constant dense<0.000000e+00> : vector<8x128xf32>
    %173 = tpu.matmul %172, %3, %cst_69 {dimension_numbers = #tpu.dot_dimension_numbers<[1], [0], [0], [1], [0, 0, 1, 1], [], []>} : vector<8x128xbf16>, vector<128x128xbf16>, vector<8x128xf32> -> vector<8x128xf32>
    %174 = arith.truncf %173 : vector<8x128xf32> to vector<8x128xbf16>
    %cst_70 = arith.constant dense<0.000000e+00> : vector<8x128xf32>
    %175 = tpu.matmul %171, %174, %cst_70 {dimension_numbers = #tpu.dot_dimension_numbers<[1], [0], [0], [1], [0, 0, 1, 1], [], []>} : vector<8x8xbf16>, vector<8x128xbf16>, vector<8x128xf32> -> vector<8x128xf32>
    %cst_71 = arith.constant 0.000000e+00 : f32
    %176 = vector.broadcast %cst_71 : f32 to vector<8x128xf32>
    %177 = arith.maximumf %175, %176 : vector<8x128xf32>
    %cst_72 = arith.constant dense<0.000000e+00> : vector<8xf32>
    %178 = vector.multi_reduction <add>, %177, %cst_72 [1] : vector<8x128xf32> to vector<8xf32>
    %179 = vector.shape_cast %178 : vector<8xf32> to vector<8x1xf32>
    %cst_73 = arith.constant 3.125000e-02 : f32
    %180 = vector.broadcast %cst_73 : f32 to vector<8x1xf32>
    %181 = arith.mulf %179, %180 : vector<8x1xf32>
    %182 = vector.broadcast %181 : vector<8x1xf32> to vector<8x128xf32>
    %183 = arith.subf %177, %182 : vector<8x128xf32>
    %184 = arith.mulf %183, %183 : vector<8x128xf32>
    %cst_74 = arith.constant dense<0.000000e+00> : vector<8xf32>
    %185 = vector.multi_reduction <add>, %184, %cst_74 [1] : vector<8x128xf32> to vector<8xf32>
    %186 = vector.shape_cast %185 : vector<8xf32> to vector<8x1xf32>
    %cst_75 = arith.constant 9.600000e+01 : f32
    %187 = vector.broadcast %cst_75 : f32 to vector<8x1xf32>
    %188 = arith.mulf %187, %181 : vector<8x1xf32>
    %189 = arith.mulf %188, %181 : vector<8x1xf32>
    %190 = arith.subf %186, %189 : vector<8x1xf32>
    %cst_76 = arith.constant 3.125000e-02 : f32
    %191 = vector.broadcast %cst_76 : f32 to vector<8x1xf32>
    %192 = arith.mulf %190, %191 : vector<8x1xf32>
    %cst_77 = arith.constant 9.99999974E-6 : f32
    %193 = vector.broadcast %cst_77 : f32 to vector<8x1xf32>
    %194 = arith.addf %192, %193 : vector<8x1xf32>
    %195 = math.rsqrt %194 : vector<8x1xf32>
    %196 = vector.broadcast %195 : vector<8x1xf32> to vector<8x128xf32>
    %197 = arith.mulf %183, %196 : vector<8x128xf32>
    %198 = vector.broadcast %0 : vector<1x128xf32> to vector<8x128xf32>
    %199 = arith.mulf %197, %198 : vector<8x128xf32>
    %200 = vector.broadcast %1 : vector<1x128xf32> to vector<8x128xf32>
    %201 = arith.addf %199, %200 : vector<8x128xf32>
    %202 = arith.addf %201, %7 : vector<8x128xf32>
    %203 = arith.truncf %202 : vector<8x128xf32> to vector<8x128xbf16>
    %cst_78 = arith.constant dense<0.000000e+00> : vector<8x128xf32>
    %204 = tpu.matmul %203, %3, %cst_78 {dimension_numbers = #tpu.dot_dimension_numbers<[1], [0], [0], [1], [0, 0, 1, 1], [], []>} : vector<8x128xbf16>, vector<128x128xbf16>, vector<8x128xf32> -> vector<8x128xf32>
    %205 = arith.truncf %204 : vector<8x128xf32> to vector<8x128xbf16>
    %cst_79 = arith.constant dense<0.000000e+00> : vector<8x128xf32>
    %206 = tpu.matmul %171, %205, %cst_79 {dimension_numbers = #tpu.dot_dimension_numbers<[1], [0], [0], [1], [0, 0, 1, 1], [], []>} : vector<8x8xbf16>, vector<8x128xbf16>, vector<8x128xf32> -> vector<8x128xf32>
    %cst_80 = arith.constant 0.000000e+00 : f32
    %207 = vector.broadcast %cst_80 : f32 to vector<8x128xf32>
    %208 = arith.maximumf %206, %207 : vector<8x128xf32>
    %cst_81 = arith.constant dense<0.000000e+00> : vector<8xf32>
    %209 = vector.multi_reduction <add>, %208, %cst_81 [1] : vector<8x128xf32> to vector<8xf32>
    %210 = vector.shape_cast %209 : vector<8xf32> to vector<8x1xf32>
    %cst_82 = arith.constant 3.125000e-02 : f32
    %211 = vector.broadcast %cst_82 : f32 to vector<8x1xf32>
    %212 = arith.mulf %210, %211 : vector<8x1xf32>
    %213 = vector.broadcast %212 : vector<8x1xf32> to vector<8x128xf32>
    %214 = arith.subf %208, %213 : vector<8x128xf32>
    %215 = arith.mulf %214, %214 : vector<8x128xf32>
    %cst_83 = arith.constant dense<0.000000e+00> : vector<8xf32>
    %216 = vector.multi_reduction <add>, %215, %cst_83 [1] : vector<8x128xf32> to vector<8xf32>
    %217 = vector.shape_cast %216 : vector<8xf32> to vector<8x1xf32>
    %cst_84 = arith.constant 9.600000e+01 : f32
    %218 = vector.broadcast %cst_84 : f32 to vector<8x1xf32>
    %219 = arith.mulf %218, %212 : vector<8x1xf32>
    %220 = arith.mulf %219, %212 : vector<8x1xf32>
    %221 = arith.subf %217, %220 : vector<8x1xf32>
    %cst_85 = arith.constant 3.125000e-02 : f32
    %222 = vector.broadcast %cst_85 : f32 to vector<8x1xf32>
    %223 = arith.mulf %221, %222 : vector<8x1xf32>
    %cst_86 = arith.constant 9.99999974E-6 : f32
    %224 = vector.broadcast %cst_86 : f32 to vector<8x1xf32>
    %225 = arith.addf %223, %224 : vector<8x1xf32>
    %226 = math.rsqrt %225 : vector<8x1xf32>
    %227 = vector.broadcast %226 : vector<8x1xf32> to vector<8x128xf32>
    %228 = arith.mulf %214, %227 : vector<8x128xf32>
    %229 = vector.broadcast %0 : vector<1x128xf32> to vector<8x128xf32>
    %230 = arith.mulf %228, %229 : vector<8x128xf32>
    %231 = vector.broadcast %1 : vector<1x128xf32> to vector<8x128xf32>
    %232 = arith.addf %230, %231 : vector<8x128xf32>
    %233 = arith.addf %232, %202 : vector<8x128xf32>
    %234 = arith.truncf %233 : vector<8x128xf32> to vector<8x128xbf16>
    %cst_87 = arith.constant dense<0.000000e+00> : vector<8x128xf32>
    %235 = tpu.matmul %234, %3, %cst_87 {dimension_numbers = #tpu.dot_dimension_numbers<[1], [0], [0], [1], [0, 0, 1, 1], [], []>} : vector<8x128xbf16>, vector<128x128xbf16>, vector<8x128xf32> -> vector<8x128xf32>
    %236 = arith.truncf %235 : vector<8x128xf32> to vector<8x128xbf16>
    %cst_88 = arith.constant dense<0.000000e+00> : vector<8x128xf32>
    %237 = tpu.matmul %171, %236, %cst_88 {dimension_numbers = #tpu.dot_dimension_numbers<[1], [0], [0], [1], [0, 0, 1, 1], [], []>} : vector<8x8xbf16>, vector<8x128xbf16>, vector<8x128xf32> -> vector<8x128xf32>
    %cst_89 = arith.constant 0.000000e+00 : f32
    %238 = vector.broadcast %cst_89 : f32 to vector<8x128xf32>
    %239 = arith.maximumf %237, %238 : vector<8x128xf32>
    %cst_90 = arith.constant dense<0.000000e+00> : vector<8xf32>
    %240 = vector.multi_reduction <add>, %239, %cst_90 [1] : vector<8x128xf32> to vector<8xf32>
    %241 = vector.shape_cast %240 : vector<8xf32> to vector<8x1xf32>
    %cst_91 = arith.constant 3.125000e-02 : f32
    %242 = vector.broadcast %cst_91 : f32 to vector<8x1xf32>
    %243 = arith.mulf %241, %242 : vector<8x1xf32>
    %244 = vector.broadcast %243 : vector<8x1xf32> to vector<8x128xf32>
    %245 = arith.subf %239, %244 : vector<8x128xf32>
    %246 = arith.mulf %245, %245 : vector<8x128xf32>
    %cst_92 = arith.constant dense<0.000000e+00> : vector<8xf32>
    %247 = vector.multi_reduction <add>, %246, %cst_92 [1] : vector<8x128xf32> to vector<8xf32>
    %248 = vector.shape_cast %247 : vector<8xf32> to vector<8x1xf32>
    %cst_93 = arith.constant 9.600000e+01 : f32
    %249 = vector.broadcast %cst_93 : f32 to vector<8x1xf32>
    %250 = arith.mulf %249, %243 : vector<8x1xf32>
    %251 = arith.mulf %250, %243 : vector<8x1xf32>
    %252 = arith.subf %248, %251 : vector<8x1xf32>
    %cst_94 = arith.constant 3.125000e-02 : f32
    %253 = vector.broadcast %cst_94 : f32 to vector<8x1xf32>
    %254 = arith.mulf %252, %253 : vector<8x1xf32>
    %cst_95 = arith.constant 9.99999974E-6 : f32
    %255 = vector.broadcast %cst_95 : f32 to vector<8x1xf32>
    %256 = arith.addf %254, %255 : vector<8x1xf32>
    %257 = math.rsqrt %256 : vector<8x1xf32>
    %258 = vector.broadcast %257 : vector<8x1xf32> to vector<8x128xf32>
    %259 = arith.mulf %245, %258 : vector<8x128xf32>
    %260 = vector.broadcast %0 : vector<1x128xf32> to vector<8x128xf32>
    %261 = arith.mulf %259, %260 : vector<8x128xf32>
    %262 = vector.broadcast %1 : vector<1x128xf32> to vector<8x128xf32>
    %263 = arith.addf %261, %262 : vector<8x128xf32>
    %264 = arith.addf %263, %233 : vector<8x128xf32>
    %265 = arith.truncf %264 : vector<8x128xf32> to vector<8x128xbf16>
    %cst_96 = arith.constant dense<0.000000e+00> : vector<8x128xf32>
    %266 = tpu.matmul %265, %3, %cst_96 {dimension_numbers = #tpu.dot_dimension_numbers<[1], [0], [0], [1], [0, 0, 1, 1], [], []>} : vector<8x128xbf16>, vector<128x128xbf16>, vector<8x128xf32> -> vector<8x128xf32>
    %267 = arith.truncf %266 : vector<8x128xf32> to vector<8x128xbf16>
    %cst_97 = arith.constant dense<0.000000e+00> : vector<8x128xf32>
    %268 = tpu.matmul %171, %267, %cst_97 {dimension_numbers = #tpu.dot_dimension_numbers<[1], [0], [0], [1], [0, 0, 1, 1], [], []>} : vector<8x8xbf16>, vector<8x128xbf16>, vector<8x128xf32> -> vector<8x128xf32>
    %cst_98 = arith.constant 0.000000e+00 : f32
    %269 = vector.broadcast %cst_98 : f32 to vector<8x128xf32>
    %270 = arith.maximumf %268, %269 : vector<8x128xf32>
    %cst_99 = arith.constant dense<0.000000e+00> : vector<8xf32>
    %271 = vector.multi_reduction <add>, %270, %cst_99 [1] : vector<8x128xf32> to vector<8xf32>
    %272 = vector.shape_cast %271 : vector<8xf32> to vector<8x1xf32>
    %cst_100 = arith.constant 3.125000e-02 : f32
    %273 = vector.broadcast %cst_100 : f32 to vector<8x1xf32>
    %274 = arith.mulf %272, %273 : vector<8x1xf32>
    %275 = vector.broadcast %274 : vector<8x1xf32> to vector<8x128xf32>
    %276 = arith.subf %270, %275 : vector<8x128xf32>
    %277 = arith.mulf %276, %276 : vector<8x128xf32>
    %cst_101 = arith.constant dense<0.000000e+00> : vector<8xf32>
    %278 = vector.multi_reduction <add>, %277, %cst_101 [1] : vector<8x128xf32> to vector<8xf32>
    %279 = vector.shape_cast %278 : vector<8xf32> to vector<8x1xf32>
    %cst_102 = arith.constant 9.600000e+01 : f32
    %280 = vector.broadcast %cst_102 : f32 to vector<8x1xf32>
    %281 = arith.mulf %280, %274 : vector<8x1xf32>
    %282 = arith.mulf %281, %274 : vector<8x1xf32>
    %283 = arith.subf %279, %282 : vector<8x1xf32>
    %cst_103 = arith.constant 3.125000e-02 : f32
    %284 = vector.broadcast %cst_103 : f32 to vector<8x1xf32>
    %285 = arith.mulf %283, %284 : vector<8x1xf32>
    %cst_104 = arith.constant 9.99999974E-6 : f32
    %286 = vector.broadcast %cst_104 : f32 to vector<8x1xf32>
    %287 = arith.addf %285, %286 : vector<8x1xf32>
    %288 = math.rsqrt %287 : vector<8x1xf32>
    %289 = vector.broadcast %288 : vector<8x1xf32> to vector<8x128xf32>
    %290 = arith.mulf %276, %289 : vector<8x128xf32>
    %291 = vector.broadcast %0 : vector<1x128xf32> to vector<8x128xf32>
    %292 = arith.mulf %290, %291 : vector<8x128xf32>
    %293 = vector.broadcast %1 : vector<1x128xf32> to vector<8x128xf32>
    %294 = arith.addf %292, %293 : vector<8x128xf32>
    %295 = arith.addf %294, %264 : vector<8x128xf32>
    %296 = arith.truncf %295 : vector<8x128xf32> to vector<8x128xbf16>
    %cst_105 = arith.constant dense<0.000000e+00> : vector<8x128xf32>
    %297 = tpu.matmul %296, %4, %cst_105 {dimension_numbers = #tpu.dot_dimension_numbers<[1], [0], [0], [1], [0, 0, 1, 1], [], []>} : vector<8x128xbf16>, vector<128x128xbf16>, vector<8x128xf32> -> vector<8x128xf32>
    %298 = arith.truncf %297 : vector<8x128xf32> to vector<8x128xbf16>
    %cst_106 = arith.constant dense<0.000000e+00> : vector<8x8xf32>
    %299 = tpu.matmul %298, %296, %cst_106 {dimension_numbers = #tpu.dot_dimension_numbers<[1], [1], [0], [0], [0, 0, 1, 0], [], []>} : vector<8x128xbf16>, vector<8x128xbf16>, vector<8x8xf32> -> vector<8x8xf32>
    %c1_107 = arith.constant 1 : index
    %c0_108 = arith.constant 0 : index
    %c0_109 = arith.constant 0 : index
    %300 = vector.load %arg3[%c1_107, %c0_108, %c0_109] : memref<2x1x8xf32, #tpu.memory_space<vmem>>, vector<1x1x8xf32>
    %301 = vector.shape_cast %300 : vector<1x1x8xf32> to vector<1x8xf32>
    %cst_110 = arith.constant 1.000000e+00 : f32
    %302 = vector.broadcast %cst_110 : f32 to vector<1x8xf32>
    %303 = arith.subf %302, %301 : vector<1x8xf32>
    %cst_111 = arith.constant -1.000000e+20 : f32
    %304 = vector.broadcast %cst_111 : f32 to vector<1x8xf32>
    %305 = arith.mulf %303, %304 : vector<1x8xf32>
    %306 = vector.broadcast %305 : vector<1x8xf32> to vector<8x8xf32>
    %307 = arith.addf %299, %306 : vector<8x8xf32>
    %cst_112 = arith.constant dense<0xFF800000> : vector<8xf32>
    %308 = vector.multi_reduction <maximumf>, %307, %cst_112 [1] : vector<8x8xf32> to vector<8xf32>
    %309 = vector.shape_cast %308 : vector<8xf32> to vector<8x1xf32>
    %310 = vector.broadcast %309 : vector<8x1xf32> to vector<8x8xf32>
    %311 = arith.subf %307, %310 : vector<8x8xf32>
    %312 = math.exp %311 : vector<8x8xf32>
    %cst_113 = arith.constant dense<0.000000e+00> : vector<8xf32>
    %313 = vector.multi_reduction <add>, %312, %cst_113 [1] : vector<8x8xf32> to vector<8xf32>
    %314 = vector.shape_cast %313 : vector<8xf32> to vector<8x1xf32>
    %315 = tpu.reciprocal %314 {approx = true} : vector<8x1xf32> -> vector<8x1xf32>
    %316 = vector.broadcast %315 : vector<8x1xf32> to vector<8x8xf32>
    %317 = arith.mulf %312, %316 : vector<8x8xf32>
    %318 = arith.truncf %317 : vector<8x8xf32> to vector<8x8xbf16>
    %cst_114 = arith.constant dense<0.000000e+00> : vector<8x128xf32>
    %319 = tpu.matmul %318, %296, %cst_114 {dimension_numbers = #tpu.dot_dimension_numbers<[1], [0], [0], [1], [0, 0, 1, 1], [], []>} : vector<8x8xbf16>, vector<8x128xbf16>, vector<8x128xf32> -> vector<8x128xf32>
    %c1_115 = arith.constant 1 : index
    %c0_116 = arith.constant 0 : index
    %c0_117 = arith.constant 0 : index
    %320 = vector.load %arg4[%c1_115, %c0_116, %c0_117] : memref<2x8x1xf32, #tpu.memory_space<vmem>>, vector<1x8x1xf32>
    %321 = vector.shape_cast %320 : vector<1x8x1xf32> to vector<8x1xf32>
    %322 = vector.broadcast %321 : vector<8x1xf32> to vector<8x128xf32>
    %323 = arith.mulf %319, %322 : vector<8x128xf32>
    %324 = vector.broadcast %2 : vector<1x128xf32> to vector<8x128xf32>
    %325 = arith.addf %323, %324 : vector<8x128xf32>
    %c1_118 = arith.constant 1 : index
    %c0_119 = arith.constant 0 : index
    %c0_120 = arith.constant 0 : index
    %326 = vector.load %arg10[%c1_118, %c0_119, %c0_120] : memref<2x8x256xf32, #tpu.memory_space<vmem>>, vector<1x8x128xf32>
    %327 = vector.shape_cast %326 : vector<1x8x128xf32> to vector<8x128xf32>
    %328 = vector.shape_cast %325 : vector<8x128xf32> to vector<1x8x128xf32>
    tpu.vector_store %arg10[%c1_118, %c0_119, %c0_120], %328 {strides = array<i32>} : memref<2x8x256xf32, #tpu.memory_space<vmem>>, vector<1x8x128xf32>,
    %c1_121 = arith.constant 1 : index
    %c0_122 = arith.constant 0 : index
    %c128_123 = arith.constant 128 : index
    %329 = vector.load %arg10[%c1_121, %c0_122, %c128_123] : memref<2x8x256xf32, #tpu.memory_space<vmem>>, vector<1x8x128xf32>
    %330 = vector.shape_cast %329 : vector<1x8x128xf32> to vector<8x128xf32>
    %331 = vector.shape_cast %295 : vector<8x128xf32> to vector<1x8x128xf32>
    tpu.vector_store %arg10[%c1_121, %c0_122, %c128_123], %331 {strides = array<i32>} : memref<2x8x256xf32, #tpu.memory_space<vmem>>, vector<1x8x128xf32>,
    return
  }
  func.func @transform_0(%arg0: i32) -> (i32, i32) {
    %c0_i32 = arith.constant 0 : i32
    %c0_i32_0 = arith.constant 0 : i32
    %c0_i32_1 = arith.constant 0 : i32
    return %c0_i32, %c0_i32_0 : i32, i32
  }
  func.func @transform_1(%arg0: i32) -> (i32, i32, i32) {
    %c0_i32 = arith.constant 0 : i32
    %c0_i32_0 = arith.constant 0 : i32
    %c0_i32_1 = arith.constant 0 : i32
    return %arg0, %c0_i32, %c0_i32_0 : i32, i32, i32
  }
  func.func @transform_2(%arg0: i32) -> (i32, i32, i32) {
    %c0_i32 = arith.constant 0 : i32
    %c0_i32_0 = arith.constant 0 : i32
    %c0_i32_1 = arith.constant 0 : i32
    return %arg0, %c0_i32, %c0_i32_0 : i32, i32, i32
  }
  func.func @transform_3(%arg0: i32) -> (i32, i32, i32) {
    %c0_i32 = arith.constant 0 : i32
    %c0_i32_0 = arith.constant 0 : i32
    %c0_i32_1 = arith.constant 0 : i32
    return %arg0, %c0_i32, %c0_i32_0 : i32, i32, i32
  }
  func.func @transform_4(%arg0: i32) -> (i32, i32) {
    %c0_i32 = arith.constant 0 : i32
    %c0_i32_0 = arith.constant 0 : i32
    %c0_i32_1 = arith.constant 0 : i32
    return %c0_i32, %c0_i32_0 : i32, i32
  }
  func.func @transform_5(%arg0: i32) -> (i32, i32) {
    %c0_i32 = arith.constant 0 : i32
    %c0_i32_0 = arith.constant 0 : i32
    %c0_i32_1 = arith.constant 0 : i32
    return %c0_i32, %c0_i32_0 : i32, i32
  }
  func.func @transform_6(%arg0: i32) -> (i32, i32) {
    %c0_i32 = arith.constant 0 : i32
    %c0_i32_0 = arith.constant 0 : i32
    %c0_i32_1 = arith.constant 0 : i32
    return %c0_i32, %c0_i32_0 : i32, i32
  }
  func.func @transform_7(%arg0: i32) -> (i32, i32) {
    %c0_i32 = arith.constant 0 : i32
    %c0_i32_0 = arith.constant 0 : i32
    %c0_i32_1 = arith.constant 0 : i32
    return %c0_i32, %c0_i32_0 : i32, i32
  }
  func.func @transform_8(%arg0: i32) -> (i32, i32) {
    %c0_i32 = arith.constant 0 : i32
    %c0_i32_0 = arith.constant 0 : i32
    %c0_i32_1 = arith.constant 0 : i32
    return %c0_i32, %c0_i32_0 : i32, i32
  }
  func.func @transform_9(%arg0: i32) -> (i32, i32, i32) {
    %c0_i32 = arith.constant 0 : i32
    %c0_i32_0 = arith.constant 0 : i32
    %c0_i32_1 = arith.constant 0 : i32
    return %arg0, %c0_i32, %c0_i32_0 : i32, i32, i32
  }
}

</mosaic_0001>

<llo_original>
// kernel: tpu_custom_call.1
$region0: #{tpu_custom_call.1}
  #allocation0 [shape = 'u32[]', space=smem, size = 0x4, offset = 0x4, fixed_abs, tag = 'smem constant byte address 0x4 - core index']
  #allocation1 [shape = 'u32[144,128]{1,0:T(1,128)}', space=vmem, size = 0x12000, scoped, tag = 'internal scratch']
  %s0 = inlined_call_operand.vmem [shape: f32[1,128], index: 0, kind: input, shape index: {}]
  %s1 = inlined_call_operand.vmem [shape: bf16[2,8,8], index: 1, kind: input, shape index: {}]
  %s2 = inlined_call_operand.vmem [shape: f32[2,1,8], index: 2, kind: input, shape index: {}]
  %s3 = inlined_call_operand.vmem [shape: f32[2,8,1], index: 3, kind: input, shape index: {}]
  %s4 = inlined_call_operand.hbm [shape: bf16[128,128], index: 4, kind: input, shape index: {}]
  %s5 = inlined_call_operand.vmem [shape: f32[1,128], index: 5, kind: input, shape index: {}]
  %s6 = inlined_call_operand.vmem [shape: f32[1,128], index: 6, kind: input, shape index: {}]
  %s7 = inlined_call_operand.hbm [shape: bf16[128,128], index: 7, kind: input, shape index: {}]
  %s8 = inlined_call_operand.vmem [shape: f32[1,128], index: 8, kind: input, shape index: {}]
  %s9 = inlined_call_operand.hbm [shape: f32[2,8,256], index: 9, kind: output, shape index: {}]
  %s10 = sld [smem:[#allocation0]]
  $region54: #{tpu_custom_call.1} parent=0
    _
  %s12 = ssub.s32 1, %s10
  %s13 = scalar_select 0, %s12, %s10
  $region1: #{tpu_custom_call.1} parent=0
    #allocation2 [shape = 'u8[32768]{0}', space=vmem, size = 0x8000, scoped, tag = 'input window, operand 4, single buffered']
    #allocation3 [shape = 's32[1]{0}', space=sflag, size = 0x4, scoped, tag = 'scoped memory for tpu_custom_call.1']
    #allocation4 [shape = 's32[1]{0}', space=sflag, size = 0x4, scoped, tag = 'scoped memory for tpu_custom_call.1']
    #allocation5 [shape = 'u8[32768]{0}', space=vmem, size = 0x8000, scoped, tag = 'input window, operand 7, single buffered']
    #allocation6 [shape = 's32[1]{0}', space=sflag, size = 0x4, scoped, tag = 'scoped memory for tpu_custom_call.1']
    #allocation7 [shape = 'u8[16384]{0}', space=vmem, size = 0x4000, scoped, tag = 'output window, operand 0, single buffered']
    %14 = vsyncpa [#allocation3], 0
    %15 = vsyncpa [#allocation6], 0
    %16 = vsyncpa [#allocation4], 0
    // Predicated region
    $region2: #{tpu_custom_call.1} parent=1 // pred_check
      _
    $region3: #{tpu_custom_call.1} parent=1 // pred_check_branch
      %18 = sbr.rel (0) target = $region5
    $region4: #{tpu_custom_call.1} parent=1 // pred_region
      _
    $region5: #{tpu_custom_call.1} parent=1 // pred_fallthru
      _
    // Predicated region
    $region6: #{tpu_custom_call.1} parent=1 // pred_check
      _
    $region7: #{tpu_custom_call.1} parent=1 // pred_check_branch
      %20 = sbr.rel (0) target = $region9
    $region8: #{tpu_custom_call.1} parent=1 // pred_region
      _
    $region9: #{tpu_custom_call.1} parent=1 // pred_fallthru
      _
    // Predicated region
    $region10: #{tpu_custom_call.1} parent=1 // pred_check
      _
    $region11: #{tpu_custom_call.1} parent=1 // pred_check_branch
      %22 = sbr.rel (0) target = $region13
    $region12: #{tpu_custom_call.1} parent=1 // pred_region
      _
    $region13: #{tpu_custom_call.1} parent=1 // pred_fallthru
      _
    // Predicated region
    $region14: #{tpu_custom_call.1} parent=1 // pred_check
      _
    $region15: #{tpu_custom_call.1} parent=1 // pred_check_branch
      %24 = sbr.rel (0) target = $region17
    $region16: #{tpu_custom_call.1} parent=1 // pred_region
      _
    $region17: #{tpu_custom_call.1} parent=1 // pred_fallthru
      _
    // Predicated region
    $region18: #{tpu_custom_call.1} parent=1 // pred_check
      _
    $region19: #{tpu_custom_call.1} parent=1 // pred_check_branch
      %26 = sbr.rel (0) target = $region21
    $region20: #{tpu_custom_call.1} parent=1 // pred_region
      %s28 = ssub.s32 1024, 1024
      %29 = vsyncadd [#allocation3], %s28
      %s30 = sshll.u32 [#allocation2], 4
      %s31 = int_to_ptr.vmem [resolvable:$true] %s30
      %36 = dma.hbm_to_vmem [thread:$0]  %s4, 1024, %s31, [#allocation3], 64, 64, 4
    $region21: #{tpu_custom_call.1} parent=1 // pred_fallthru
      _
    // Predicated region
    $region22: #{tpu_custom_call.1} parent=1 // pred_check
      _
    $region23: #{tpu_custom_call.1} parent=1 // pred_check_branch
      %38 = sbr.rel (0) target = $region25
    $region24: #{tpu_custom_call.1} parent=1 // pred_region
      _
    $region25: #{tpu_custom_call.1} parent=1 // pred_fallthru
      _
    // Predicated region
    $region26: #{tpu_custom_call.1} parent=1 // pred_check
      _
    $region27: #{tpu_custom_call.1} parent=1 // pred_check_branch
      %40 = sbr.rel (0) target = $region29
    $region28: #{tpu_custom_call.1} parent=1 // pred_region
      _
    $region29: #{tpu_custom_call.1} parent=1 // pred_fallthru
      _
    // Predicated region
    $region30: #{tpu_custom_call.1} parent=1 // pred_check
      _
    $region31: #{tpu_custom_call.1} parent=1 // pred_check_branch
      %42 = sbr.rel (0) target = $region33
    $region32: #{tpu_custom_call.1} parent=1 // pred_region
      %s44 = ssub.s32 1024, 1024
      %45 = vsyncadd [#allocation6], %s44
      %s46 = sshll.u32 [#allocation5], 4
      %s47 = int_to_ptr.vmem [resolvable:$true] %s46
      %52 = dma.hbm_to_vmem [thread:$0]  %s7, 1024, %s47, [#allocation6], 64, 64, 4
    $region33: #{tpu_custom_call.1} parent=1 // pred_fallthru
      _
    // Predicated region
    $region34: #{tpu_custom_call.1} parent=1 // pred_check
      _
    $region35: #{tpu_custom_call.1} parent=1 // pred_check_branch
      %54 = sbr.rel (0) target = $region37
    $region36: #{tpu_custom_call.1} parent=1 // pred_region
      _
    $region37: #{tpu_custom_call.1} parent=1 // pred_fallthru
      _
    // Predicated region
    $region38: #{tpu_custom_call.1} parent=1 // pred_check
      _
    $region39: #{tpu_custom_call.1} parent=1 // pred_check_branch
      %56 = sbr.rel (0) target = $region41
    $region40: #{tpu_custom_call.1} parent=1 // pred_region
      %57 = dma.done [#allocation3], 1024
    $region41: #{tpu_custom_call.1} parent=1 // pred_fallthru
      _
    // Predicated region
    $region42: #{tpu_custom_call.1} parent=1 // pred_check
      _
    $region43: #{tpu_custom_call.1} parent=1 // pred_check_branch
      %59 = sbr.rel (0) target = $region45
    $region44: #{tpu_custom_call.1} parent=1 // pred_region
      %60 = dma.done [#allocation6], 1024
    $region45: #{tpu_custom_call.1} parent=1 // pred_fallthru
      _
    %v62 = vld [vmem:[%s5] sm:$0x1]
    %v63 = vld [vmem:[%s6] sm:$0x1]
    %v64 = vld [vmem:[%s8] sm:$0x1]
    %v65 = vld [vmem:[#allocation2] sm:$0xf]
    %v66 = vld [vmem:[#allocation2 + $0x4] sm:$0xf]
    %v67 = vld [vmem:[#allocation2 + $0x8] sm:$0xf]
    %v68 = vld [vmem:[#allocation2 + $0xc] sm:$0xf]
    %v69 = vld [vmem:[#allocation2 + $0x10] sm:$0xf]
    %v70 = vld [vmem:[#allocation2 + $0x14] sm:$0xf]
    %v71 = vld [vmem:[#allocation2 + $0x18] sm:$0xf]
    %v72 = vld [vmem:[#allocation2 + $0x1c] sm:$0xf]
    %v73 = vld [vmem:[#allocation2 + $0x20] sm:$0xf]
    %v74 = vld [vmem:[#allocation2 + $0x24] sm:$0xf]
    %v75 = vld [vmem:[#allocation2 + $0x28] sm:$0xf]
    %v76 = vld [vmem:[#allocation2 + $0x2c] sm:$0xf]
    %v77 = vld [vmem:[#allocation2 + $0x30] sm:$0xf]
    %v78 = vld [vmem:[#allocation2 + $0x34] sm:$0xf]
    %v79 = vld [vmem:[#allocation2 + $0x38] sm:$0xf]
    %v80 = vld [vmem:[#allocation2 + $0x3c] sm:$0xf]
    %v81 = vld [vmem:[#allocation5] sm:$0xf]
    %v82 = vld [vmem:[#allocation5 + $0x4] sm:$0xf]
    %v83 = vld [vmem:[#allocation5 + $0x8] sm:$0xf]
    %v84 = vld [vmem:[#allocation5 + $0xc] sm:$0xf]
    %v85 = vld [vmem:[#allocation5 + $0x10] sm:$0xf]
    %v86 = vld [vmem:[#allocation5 + $0x14] sm:$0xf]
    %v87 = vld [vmem:[#allocation5 + $0x18] sm:$0xf]
    %v88 = vld [vmem:[#allocation5 + $0x1c] sm:$0xf]
    %v89 = vld [vmem:[#allocation5 + $0x20] sm:$0xf]
    %v90 = vld [vmem:[#allocation5 + $0x24] sm:$0xf]
    %v91 = vld [vmem:[#allocation5 + $0x28] sm:$0xf]
    %v92 = vld [vmem:[#allocation5 + $0x2c] sm:$0xf]
    %v93 = vld [vmem:[#allocation5 + $0x30] sm:$0xf]
    %v94 = vld [vmem:[#allocation5 + $0x34] sm:$0xf]
    %v95 = vld [vmem:[#allocation5 + $0x38] sm:$0xf]
    %v96 = vld [vmem:[#allocation5 + $0x3c] sm:$0xf]
    %v97 = vld [vmem:[%s0] sm:$0x1]
    %v99 = vlaneseq
    %v100 = vshrl.u32 %v99, 7
    %v101 = vsub.s32 0, %v100
    %v102 = vrot.slane %v97, %v101
    %v104 = vld [vmem:[%s1] sm:$0xf]
    %v105 = vpack.c.bf16 %v102, %v102
    %v122 = vunpack.c.l.b16 %v65
    %v123 = vunpack.c.l.b16 %v66
    %v124 = vunpack.c.l.b16 %v67
    %v125 = vunpack.c.l.b16 %v68
    %v126 = vunpack.c.l.b16 %v69
    %v127 = vunpack.c.l.b16 %v70
    %v128 = vunpack.c.l.b16 %v71
    %v129 = vunpack.c.l.b16 %v72
    %v130 = vunpack.c.l.b16 %v73
    %v131 = vunpack.c.l.b16 %v74
    %v132 = vunpack.c.l.b16 %v75
    %v133 = vunpack.c.l.b16 %v76
    %v134 = vunpack.c.l.b16 %v77
    %v135 = vunpack.c.l.b16 %v78
    %v136 = vunpack.c.l.b16 %v79
    %v137 = vunpack.c.l.b16 %v80
    %v138 = vpack.c.b16 %v123, %v122
    %v139 = vpack.c.b16 %v125, %v124
    %v140 = vpack.c.b16 %v127, %v126
    %v141 = vpack.c.b16 %v129, %v128
    %v142 = vpack.c.b16 %v131, %v130
    %v143 = vpack.c.b16 %v133, %v132
    %v144 = vpack.c.b16 %v135, %v134
    %v145 = vpack.c.b16 %v137, %v136
    %154 = vmatprep.subr.bf16.mxu0 0
    %155 = vmatpush1.bf16.msra.mxu0 %v145
    %156 = vmatprep.subr.bf16.mxu0 0
    %157 = vmatpush1.bf16.msra.mxu0 %v144
    %158 = vmatprep.subr.bf16.mxu0 0
    %159 = vmatpush1.bf16.msra.mxu0 %v143
    %160 = vmatprep.subr.bf16.mxu0 0
    %161 = vmatpush1.bf16.msra.mxu0 %v142
    %162 = vmatprep.subr.bf16.mxu0 0
    %163 = vmatpush1.bf16.msra.mxu0 %v141
    %164 = vmatprep.subr.bf16.mxu0 0
    %165 = vmatpush1.bf16.msra.mxu0 %v140
    %166 = vmatprep.subr.bf16.mxu0 0
    %167 = vmatpush1.bf16.msra.mxu0 %v139
    %168 = vmatprep.subr.bf16.mxu0 0
    %169 = vmatpush1.bf16.msra.mxu0 %v138
    %170 = vmatprep.subr.bf16.mxu0 0
    %171 = vmatpush2.bf16.msra.mxu0 0
    %172 = vmatprep.subr.bf16.mxu0 0
    %173 = vmatpush2.bf16.msra.mxu0 0
    %174 = vmatprep.subr.bf16.mxu0 0
    %175 = vmatpush2.bf16.msra.mxu0 0
    %176 = vmatprep.subr.bf16.mxu0 0
    %177 = vmatpush2.bf16.msra.mxu0 0
    %178 = vmatprep.subr.bf16.mxu0 0
    %179 = vmatpush2.bf16.msra.mxu0 0
    %180 = vmatprep.subr.bf16.mxu0 0
    %181 = vmatpush2.bf16.msra.mxu0 0
    %182 = vmatprep.subr.bf16.mxu0 0
    %183 = vmatpush2.bf16.msra.mxu0 0
    %184 = vmatprep.subr.bf16.mxu0 0
    %185 = vmatpush2.bf16.msra.mxu0 0
    %186 = vmatprep.mubr.bf16.mxu0 0
    %187 = vmatmul.mubr.bf16.gmra.mxu0 %v105
    %v188 = vpop.f32.mrf.mxu0
    %v189 = vadd.f32 0.0, %v188
    %v190 = vpop.f32.mrf.mxu0
    %v191 = vpop.f32.mrf.mxu0
    %v192 = vpop.f32.mrf.mxu0
    %193 = vdwg.mxu0
    %v194 = vpack.c.bf16 %v189, %v189
    %vm195 = vcmask 64512
    %v197 = vsel %vm195, %v104, 0
    %vm199 = vcmask 1043456
    %v201 = vsel %vm199, %v194, 0
    %203 = vmatprep.subr.bf16.mxu0 0
    %204 = vmatpush1.bf16.msra.mxu0 0
    %205 = vmatprep.subr.bf16.mxu0 0
    %206 = vmatpush1.bf16.msra.mxu0 0
    %207 = vmatprep.subr.bf16.mxu0 0
    %208 = vmatpush1.bf16.msra.mxu0 0
    %209 = vmatprep.subr.bf16.mxu0 0
    %210 = vmatpush1.bf16.msra.mxu0 0
    %211 = vmatprep.subr.bf16.mxu0 0
    %212 = vmatpush1.bf16.msra.mxu0 0
    %213 = vmatprep.subr.bf16.mxu0 0
    %214 = vmatpush1.bf16.msra.mxu0 0
    %215 = vmatprep.subr.bf16.mxu0 0
    %216 = vmatpush1.bf16.msra.mxu0 0
    %217 = vmatprep.subr.bf16.mxu0 0
    %218 = vmatpush1.bf16.msra.mxu0 %v201
    %219 = vmatprep.subr.bf16.mxu0 0
    %220 = vmatpush2.bf16.msra.mxu0 0
    %221 = vmatprep.subr.bf16.mxu0 0
    %222 = vmatpush2.bf16.msra.mxu0 0
    %223 = vmatprep.subr.bf16.mxu0 0
    %224 = vmatpush2.bf16.msra.mxu0 0
    %225 = vmatprep.subr.bf16.mxu0 0
    %226 = vmatpush2.bf16.msra.mxu0 0
    %227 = vmatprep.subr.bf16.mxu0 0
    %228 = vmatpush2.bf16.msra.mxu0 0
    %229 = vmatprep.subr.bf16.mxu0 0
    %230 = vmatpush2.bf16.msra.mxu0 0
    %231 = vmatprep.subr.bf16.mxu0 0
    %232 = vmatpush2.bf16.msra.mxu0 0
    %233 = vmatprep.subr.bf16.mxu0 0
    %234 = vmatpush2.bf16.msra.mxu0 0
    %235 = vmatprep.mubr.bf16.mxu0 0
    %236 = vmatmul.mubr.bf16.gmra.mxu0 %v197
    %v237 = vpop.f32.mrf.mxu0
    %v238 = vadd.f32 0.0, %v237
    %v239 = vpop.f32.mrf.mxu0
    %v240 = vpop.f32.mrf.mxu0
    %v241 = vpop.f32.mrf.mxu0
    %242 = vdwg.mxu0
    %v243 = vmax.f32 %v238, 0.0
    %244 = vadd.xlane.f32.xlu0 %v243
    %v245 = vpop.xlane.xlu0 %244
    %v246 = vmul.f32 %v245, 0.03125
    %v247 = vsub.f32 %v243, %v246
    %v248 = vmul.f32 %v247, %v247
    %249 = vadd.xlane.f32.xlu0 %v248
    %v250 = vpop.xlane.xlu0 %249
    %v251 = vmul.f32 %v246, 96.0
    %v252 = vmul.f32 %v251, %v246
    %v253 = vsub.f32 %v250, %v252
    %v254 = vmul.f32 %v253, 0.03125
    %v255 = vadd.f32 %v254, 1e-05
    %v256 = vrsqrt.pop %v255
    %v257 = vmul.f32 %v247, %v256
    %v259 = vlaneseq
    %v260 = vshrl.u32 %v259, 7
    %v261 = vsub.s32 0, %v260
    %v262 = vrot.slane %v62, %v261
    %v264 = vmul.f32 %v257, %v262
    %v266 = vlaneseq
    %v267 = vshrl.u32 %v266, 7
    %v268 = vsub.s32 0, %v267
    %v269 = vrot.slane %v63, %v268
    %v271 = vadd.f32 %v264, %v269
    %v272 = vadd.f32 %v271, %v102
    %v273 = vpack.c.bf16 %v272, %v272
    %274 = vmatprep.subr.bf16.mxu0 0
    %275 = vmatpush1.bf16.msra.mxu0 %v145
    %276 = vmatprep.subr.bf16.mxu0 0
    %277 = vmatpush1.bf16.msra.mxu0 %v144
    %278 = vmatprep.subr.bf16.mxu0 0
    %279 = vmatpush1.bf16.msra.mxu0 %v143
    %280 = vmatprep.subr.bf16.mxu0 0
    %281 = vmatpush1.bf16.msra.mxu0 %v142
    %282 = vmatprep.subr.bf16.mxu0 0
    %283 = vmatpush1.bf16.msra.mxu0 %v141
    %284 = vmatprep.subr.bf16.mxu0 0
    %285 = vmatpush1.bf16.msra.mxu0 %v140
    %286 = vmatprep.subr.bf16.mxu0 0
    %287 = vmatpush1.bf16.msra.mxu0 %v139
    %288 = vmatprep.subr.bf16.mxu0 0
    %289 = vmatpush1.bf16.msra.mxu0 %v138
    %290 = vmatprep.subr.bf16.mxu0 0
    %291 = vmatpush2.bf16.msra.mxu0 0
    %292 = vmatprep.subr.bf16.mxu0 0
    %293 = vmatpush2.bf16.msra.mxu0 0
    %294 = vmatprep.subr.bf16.mxu0 0
    %295 = vmatpush2.bf16.msra.mxu0 0
    %296 = vmatprep.subr.bf16.mxu0 0
    %297 = vmatpush2.bf16.msra.mxu0 0
    %298 = vmatprep.subr.bf16.mxu0 0
    %299 = vmatpush2.bf16.msra.mxu0 0
    %300 = vmatprep.subr.bf16.mxu0 0
    %301 = vmatpush2.bf16.msra.mxu0 0
    %302 = vmatprep.subr.bf16.mxu0 0
    %303 = vmatpush2.bf16.msra.mxu0 0
    %304 = vmatprep.subr.bf16.mxu0 0
    %305 = vmatpush2.bf16.msra.mxu0 0
    %306 = vmatprep.mubr.bf16.mxu0 0
    %307 = vmatmul.mubr.bf16.gmra.mxu0 %v273
    %v308 = vpop.f32.mrf.mxu0
    %v309 = vadd.f32 0.0, %v308
    %v310 = vpop.f32.mrf.mxu0
    %v311 = vpop.f32.mrf.mxu0
    %v312 = vpop.f32.mrf.mxu0
    %313 = vdwg.mxu0
    %v314 = vpack.c.bf16 %v309, %v309
    %v316 = vsel %vm199, %v314, 0
    %318 = vmatprep.subr.bf16.mxu0 0
    %319 = vmatpush1.bf16.msra.mxu0 0
    %320 = vmatprep.subr.bf16.mxu0 0
    %321 = vmatpush1.bf16.msra.mxu0 0
    %322 = vmatprep.subr.bf16.mxu0 0
    %323 = vmatpush1.bf16.msra.mxu0 0
    %324 = vmatprep.subr.bf16.mxu0 0
    %325 = vmatpush1.bf16.msra.mxu0 0
    %326 = vmatprep.subr.bf16.mxu0 0
    %327 = vmatpush1.bf16.msra.mxu0 0
    %328 = vmatprep.subr.bf16.mxu0 0
    %329 = vmatpush1.bf16.msra.mxu0 0
    %330 = vmatprep.subr.bf16.mxu0 0
    %331 = vmatpush1.bf16.msra.mxu0 0
    %332 = vmatprep.subr.bf16.mxu0 0
    %333 = vmatpush1.bf16.msra.mxu0 %v316
    %334 = vmatprep.subr.bf16.mxu0 0
    %335 = vmatpush2.bf16.msra.mxu0 0
    %336 = vmatprep.subr.bf16.mxu0 0
    %337 = vmatpush2.bf16.msra.mxu0 0
    %338 = vmatprep.subr.bf16.mxu0 0
    %339 = vmatpush2.bf16.msra.mxu0 0
    %340 = vmatprep.subr.bf16.mxu0 0
    %341 = vmatpush2.bf16.msra.mxu0 0
    %342 = vmatprep.subr.bf16.mxu0 0
    %343 = vmatpush2.bf16.msra.mxu0 0
    %344 = vmatprep.subr.bf16.mxu0 0
    %345 = vmatpush2.bf16.msra.mxu0 0
    %346 = vmatprep.subr.bf16.mxu0 0
    %347 = vmatpush2.bf16.msra.mxu0 0
    %348 = vmatprep.subr.bf16.mxu0 0
    %349 = vmatpush2.bf16.msra.mxu0 0
    %350 = vmatprep.mubr.bf16.mxu0 0
    %351 = vmatmul.mubr.bf16.gmra.mxu0 %v197
    %v352 = vpop.f32.mrf.mxu0
    %v353 = vadd.f32 0.0, %v352
    %v354 = vpop.f32.mrf.mxu0
    %v355 = vpop.f32.mrf.mxu0
    %v356 = vpop.f32.mrf.mxu0
    %357 = vdwg.mxu0
    %v358 = vmax.f32 %v353, 0.0
    %359 = vadd.xlane.f32.xlu0 %v358
    %v360 = vpop.xlane.xlu0 %359
    %v361 = vmul.f32 %v360, 0.03125
    %v362 = vsub.f32 %v358, %v361
    %v363 = vmul.f32 %v362, %v362
    %364 = vadd.xlane.f32.xlu0 %v363
    %v365 = vpop.xlane.xlu0 %364
    %v366 = vmul.f32 %v361, 96.0
    %v367 = vmul.f32 %v366, %v361
    %v368 = vsub.f32 %v365, %v367
    %v369 = vmul.f32 %v368, 0.03125
    %v370 = vadd.f32 %v369, 1e-05
    %v371 = vrsqrt.pop %v370
    %v372 = vmul.f32 %v362, %v371
    %v373 = vmul.f32 %v372, %v262
    %v374 = vadd.f32 %v373, %v269
    %v375 = vadd.f32 %v374, %v272
    %v376 = vpack.c.bf16 %v375, %v375
    %377 = vmatprep.subr.bf16.mxu0 0
    %378 = vmatpush1.bf16.msra.mxu0 %v145
    %379 = vmatprep.subr.bf16.mxu0 0
    %380 = vmatpush1.bf16.msra.mxu0 %v144
    %381 = vmatprep.subr.bf16.mxu0 0
    %382 = vmatpush1.bf16.msra.mxu0 %v143
    %383 = vmatprep.subr.bf16.mxu0 0
    %384 = vmatpush1.bf16.msra.mxu0 %v142
    %385 = vmatprep.subr.bf16.mxu0 0
    %386 = vmatpush1.bf16.msra.mxu0 %v141
    %387 = vmatprep.subr.bf16.mxu0 0
    %388 = vmatpush1.bf16.msra.mxu0 %v140
    %389 = vmatprep.subr.bf16.mxu0 0
    %390 = vmatpush1.bf16.msra.mxu0 %v139
    %391 = vmatprep.subr.bf16.mxu0 0
    %392 = vmatpush1.bf16.msra.mxu0 %v138
    %393 = vmatprep.subr.bf16.mxu0 0
    %394 = vmatpush2.bf16.msra.mxu0 0
    %395 = vmatprep.subr.bf16.mxu0 0
    %396 = vmatpush2.bf16.msra.mxu0 0
    %397 = vmatprep.subr.bf16.mxu0 0
    %398 = vmatpush2.bf16.msra.mxu0 0
    %399 = vmatprep.subr.bf16.mxu0 0
    %400 = vmatpush2.bf16.msra.mxu0 0
    %401 = vmatprep.subr.bf16.mxu0 0
    %402 = vmatpush2.bf16.msra.mxu0 0
    %403 = vmatprep.subr.bf16.mxu0 0
    %404 = vmatpush2.bf16.msra.mxu0 0
    %405 = vmatprep.subr.bf16.mxu0 0
    %406 = vmatpush2.bf16.msra.mxu0 0
    %407 = vmatprep.subr.bf16.mxu0 0
    %408 = vmatpush2.bf16.msra.mxu0 0
    %409 = vmatprep.mubr.bf16.mxu0 0
    %410 = vmatmul.mubr.bf16.gmra.mxu0 %v376
    %v411 = vpop.f32.mrf.mxu0
    %v412 = vadd.f32 0.0, %v411
    %v413 = vpop.f32.mrf.mxu0
    %v414 = vpop.f32.mrf.mxu0
    %v415 = vpop.f32.mrf.mxu0
    %416 = vdwg.mxu0
    %v417 = vpack.c.bf16 %v412, %v412
    %v419 = vsel %vm199, %v417, 0
    %421 = vmatprep.subr.bf16.mxu0 0
    %422 = vmatpush1.bf16.msra.mxu0 0
    %423 = vmatprep.subr.bf16.mxu0 0
    %424 = vmatpush1.bf16.msra.mxu0 0
    %425 = vmatprep.subr.bf16.mxu0 0
    %426 = vmatpush1.bf16.msra.mxu0 0
    %427 = vmatprep.subr.bf16.mxu0 0
    %428 = vmatpush1.bf16.msra.mxu0 0
    %429 = vmatprep.subr.bf16.mxu0 0
    %430 = vmatpush1.bf16.msra.mxu0 0
    %431 = vmatprep.subr.bf16.mxu0 0
    %432 = vmatpush1.bf16.msra.mxu0 0
    %433 = vmatprep.subr.bf16.mxu0 0
    %434 = vmatpush1.bf16.msra.mxu0 0
    %435 = vmatprep.subr.bf16.mxu0 0
    %436 = vmatpush1.bf16.msra.mxu0 %v419
    %437 = vmatprep.subr.bf16.mxu0 0
    %438 = vmatpush2.bf16.msra.mxu0 0
    %439 = vmatprep.subr.bf16.mxu0 0
    %440 = vmatpush2.bf16.msra.mxu0 0
    %441 = vmatprep.subr.bf16.mxu0 0
    %442 = vmatpush2.bf16.msra.mxu0 0
    %443 = vmatprep.subr.bf16.mxu0 0
    %444 = vmatpush2.bf16.msra.mxu0 0
    %445 = vmatprep.subr.bf16.mxu0 0
    %446 = vmatpush2.bf16.msra.mxu0 0
    %447 = vmatprep.subr.bf16.mxu0 0
    %448 = vmatpush2.bf16.msra.mxu0 0
    %449 = vmatprep.subr.bf16.mxu0 0
    %450 = vmatpush2.bf16.msra.mxu0 0
    %451 = vmatprep.subr.bf16.mxu0 0
    %452 = vmatpush2.bf16.msra.mxu0 0
    %453 = vmatprep.mubr.bf16.mxu0 0
    %454 = vmatmul.mubr.bf16.gmra.mxu0 %v197
    %v455 = vpop.f32.mrf.mxu0
    %v456 = vadd.f32 0.0, %v455
    %v457 = vpop.f32.mrf.mxu0
    %v458 = vpop.f32.mrf.mxu0
    %v459 = vpop.f32.mrf.mxu0
    %460 = vdwg.mxu0
    %v461 = vmax.f32 %v456, 0.0
    %462 = vadd.xlane.f32.xlu0 %v461
    %v463 = vpop.xlane.xlu0 %462
    %v464 = vmul.f32 %v463, 0.03125
    %v465 = vsub.f32 %v461, %v464
    %v466 = vmul.f32 %v465, %v465
    %467 = vadd.xlane.f32.xlu0 %v466
    %v468 = vpop.xlane.xlu0 %467
    %v469 = vmul.f32 %v464, 96.0
    %v470 = vmul.f32 %v469, %v464
    %v471 = vsub.f32 %v468, %v470
    %v472 = vmul.f32 %v471, 0.03125
    %v473 = vadd.f32 %v472, 1e-05
    %v474 = vrsqrt.pop %v473
    %v475 = vmul.f32 %v465, %v474
    %v476 = vmul.f32 %v475, %v262
    %v477 = vadd.f32 %v476, %v269
    %v478 = vadd.f32 %v477, %v375
    %v479 = vpack.c.bf16 %v478, %v478
    %480 = vmatprep.subr.bf16.mxu0 0
    %481 = vmatpush1.bf16.msra.mxu0 %v145
    %482 = vmatprep.subr.bf16.mxu0 0
    %483 = vmatpush1.bf16.msra.mxu0 %v144
    %484 = vmatprep.subr.bf16.mxu0 0
    %485 = vmatpush1.bf16.msra.mxu0 %v143
    %486 = vmatprep.subr.bf16.mxu0 0
    %487 = vmatpush1.bf16.msra.mxu0 %v142
    %488 = vmatprep.subr.bf16.mxu0 0
    %489 = vmatpush1.bf16.msra.mxu0 %v141
    %490 = vmatprep.subr.bf16.mxu0 0
    %491 = vmatpush1.bf16.msra.mxu0 %v140
    %492 = vmatprep.subr.bf16.mxu0 0
    %493 = vmatpush1.bf16.msra.mxu0 %v139
    %494 = vmatprep.subr.bf16.mxu0 0
    %495 = vmatpush1.bf16.msra.mxu0 %v138
    %496 = vmatprep.subr.bf16.mxu0 0
    %497 = vmatpush2.bf16.msra.mxu0 0
    %498 = vmatprep.subr.bf16.mxu0 0
    %499 = vmatpush2.bf16.msra.mxu0 0
    %500 = vmatprep.subr.bf16.mxu0 0
    %501 = vmatpush2.bf16.msra.mxu0 0
    %502 = vmatprep.subr.bf16.mxu0 0
    %503 = vmatpush2.bf16.msra.mxu0 0
    %504 = vmatprep.subr.bf16.mxu0 0
    %505 = vmatpush2.bf16.msra.mxu0 0
    %506 = vmatprep.subr.bf16.mxu0 0
    %507 = vmatpush2.bf16.msra.mxu0 0
    %508 = vmatprep.subr.bf16.mxu0 0
    %509 = vmatpush2.bf16.msra.mxu0 0
    %510 = vmatprep.subr.bf16.mxu0 0
    %511 = vmatpush2.bf16.msra.mxu0 0
    %512 = vmatprep.mubr.bf16.mxu0 0
    %513 = vmatmul.mubr.bf16.gmra.mxu0 %v479
    %v514 = vpop.f32.mrf.mxu0
    %v515 = vadd.f32 0.0, %v514
    %v516 = vpop.f32.mrf.mxu0
    %v517 = vpop.f32.mrf.mxu0
    %v518 = vpop.f32.mrf.mxu0
    %519 = vdwg.mxu0
    %v520 = vpack.c.bf16 %v515, %v515
    %v522 = vsel %vm199, %v520, 0
    %524 = vmatprep.subr.bf16.mxu0 0
    %525 = vmatpush1.bf16.msra.mxu0 0
    %526 = vmatprep.subr.bf16.mxu0 0
    %527 = vmatpush1.bf16.msra.mxu0 0
    %528 = vmatprep.subr.bf16.mxu0 0
    %529 = vmatpush1.bf16.msra.mxu0 0
    %530 = vmatprep.subr.bf16.mxu0 0
    %531 = vmatpush1.bf16.msra.mxu0 0
    %532 = vmatprep.subr.bf16.mxu0 0
    %533 = vmatpush1.bf16.msra.mxu0 0
    %534 = vmatprep.subr.bf16.mxu0 0
    %535 = vmatpush1.bf16.msra.mxu0 0
    %536 = vmatprep.subr.bf16.mxu0 0
    %537 = vmatpush1.bf16.msra.mxu0 0
    %538 = vmatprep.subr.bf16.mxu0 0
    %539 = vmatpush1.bf16.msra.mxu0 %v522
    %540 = vmatprep.subr.bf16.mxu0 0
    %541 = vmatpush2.bf16.msra.mxu0 0
    %542 = vmatprep.subr.bf16.mxu0 0
    %543 = vmatpush2.bf16.msra.mxu0 0
    %544 = vmatprep.subr.bf16.mxu0 0
    %545 = vmatpush2.bf16.msra.mxu0 0
    %546 = vmatprep.subr.bf16.mxu0 0
    %547 = vmatpush2.bf16.msra.mxu0 0
    %548 = vmatprep.subr.bf16.mxu0 0
    %549 = vmatpush2.bf16.msra.mxu0 0
    %550 = vmatprep.subr.bf16.mxu0 0
    %551 = vmatpush2.bf16.msra.mxu0 0
    %552 = vmatprep.subr.bf16.mxu0 0
    %553 = vmatpush2.bf16.msra.mxu0 0
    %554 = vmatprep.subr.bf16.mxu0 0
    %555 = vmatpush2.bf16.msra.mxu0 0
    %556 = vmatprep.mubr.bf16.mxu0 0
    %557 = vmatmul.mubr.bf16.gmra.mxu0 %v197
    %v558 = vpop.f32.mrf.mxu0
    %v559 = vadd.f32 0.0, %v558
    %v560 = vpop.f32.mrf.mxu0
    %v561 = vpop.f32.mrf.mxu0
    %v562 = vpop.f32.mrf.mxu0
    %563 = vdwg.mxu0
    %v564 = vmax.f32 %v559, 0.0
    %565 = vadd.xlane.f32.xlu0 %v564
    %v566 = vpop.xlane.xlu0 %565
    %v567 = vmul.f32 %v566, 0.03125
    %v568 = vsub.f32 %v564, %v567
    %v569 = vmul.f32 %v568, %v568
    %570 = vadd.xlane.f32.xlu0 %v569
    %v571 = vpop.xlane.xlu0 %570
    %v572 = vmul.f32 %v567, 96.0
    %v573 = vmul.f32 %v572, %v567
    %v574 = vsub.f32 %v571, %v573
    %v575 = vmul.f32 %v574, 0.03125
    %v576 = vadd.f32 %v575, 1e-05
    %v577 = vrsqrt.pop %v576
    %v578 = vmul.f32 %v568, %v577
    %v579 = vmul.f32 %v578, %v262
    %v580 = vadd.f32 %v579, %v269
    %v581 = vadd.f32 %v580, %v478
    %v582 = vpack.c.bf16 %v581, %v581
    %v599 = vunpack.c.l.b16 %v81
    %v600 = vunpack.c.l.b16 %v82
    %v601 = vunpack.c.l.b16 %v83
    %v602 = vunpack.c.l.b16 %v84
    %v603 = vunpack.c.l.b16 %v85
    %v604 = vunpack.c.l.b16 %v86
    %v605 = vunpack.c.l.b16 %v87
    %v606 = vunpack.c.l.b16 %v88
    %v607 = vunpack.c.l.b16 %v89
    %v608 = vunpack.c.l.b16 %v90
    %v609 = vunpack.c.l.b16 %v91
    %v610 = vunpack.c.l.b16 %v92
    %v611 = vunpack.c.l.b16 %v93
    %v612 = vunpack.c.l.b16 %v94
    %v613 = vunpack.c.l.b16 %v95
    %v614 = vunpack.c.l.b16 %v96
    %v615 = vpack.c.b16 %v600, %v599
    %v616 = vpack.c.b16 %v602, %v601
    %v617 = vpack.c.b16 %v604, %v603
    %v618 = vpack.c.b16 %v606, %v605
    %v619 = vpack.c.b16 %v608, %v607
    %v620 = vpack.c.b16 %v610, %v609
    %v621 = vpack.c.b16 %v612, %v611
    %v622 = vpack.c.b16 %v614, %v613
    %631 = vmatprep.subr.bf16.mxu0 0
    %632 = vmatpush1.bf16.msra.mxu0 %v622
    %633 = vmatprep.subr.bf16.mxu0 0
    %634 = vmatpush1.bf16.msra.mxu0 %v621
    %635 = vmatprep.subr.bf16.mxu0 0
    %636 = vmatpush1.bf16.msra.mxu0 %v620
    %637 = vmatprep.subr.bf16.mxu0 0
    %638 = vmatpush1.bf16.msra.mxu0 %v619
    %639 = vmatprep.subr.bf16.mxu0 0
    %640 = vmatpush1.bf16.msra.mxu0 %v618
    %641 = vmatprep.subr.bf16.mxu0 0
    %642 = vmatpush1.bf16.msra.mxu0 %v617
    %643 = vmatprep.subr.bf16.mxu0 0
    %644 = vmatpush1.bf16.msra.mxu0 %v616
    %645 = vmatprep.subr.bf16.mxu0 0
    %646 = vmatpush1.bf16.msra.mxu0 %v615
    %647 = vmatprep.subr.bf16.mxu0 0
    %648 = vmatpush2.bf16.msra.mxu0 0
    %649 = vmatprep.subr.bf16.mxu0 0
    %650 = vmatpush2.bf16.msra.mxu0 0
    %651 = vmatprep.subr.bf16.mxu0 0
    %652 = vmatpush2.bf16.msra.mxu0 0
    %653 = vmatprep.subr.bf16.mxu0 0
    %654 = vmatpush2.bf16.msra.mxu0 0
    %655 = vmatprep.subr.bf16.mxu0 0
    %656 = vmatpush2.bf16.msra.mxu0 0
    %657 = vmatprep.subr.bf16.mxu0 0
    %658 = vmatpush2.bf16.msra.mxu0 0
    %659 = vmatprep.subr.bf16.mxu0 0
    %660 = vmatpush2.bf16.msra.mxu0 0
    %661 = vmatprep.subr.bf16.mxu0 0
    %662 = vmatpush2.bf16.msra.mxu0 0
    %663 = vmatprep.mubr.bf16.mxu0 0
    %664 = vmatmul.mubr.bf16.gmra.mxu0 %v582
    %v665 = vpop.f32.mrf.mxu0
    %v666 = vadd.f32 0.0, %v665
    %v667 = vpop.f32.mrf.mxu0
    %v668 = vpop.f32.mrf.mxu0
    %v669 = vpop.f32.mrf.mxu0
    %670 = vdwg.mxu0
    %v671 = vpack.c.bf16 %v666, %v666
    %v672 = vld [vmem:[%s2] sm:$0x1]
    %v673 = vsub.f32 1.0, %v672
    %v674 = vmul.f32 %v673, -1e+20
    %v676 = vlaneseq
    %v677 = vshrl.u32 %v676, 7
    %v678 = vsub.s32 0, %v677
    %v679 = vrot.slane %v674, %v678
    %681 = vmatprep.subr.bf16.mxu0 0
    %682 = vmatpush1.bf16.xpose.msra.mxu0 0
    %683 = vmatprep.subr.bf16.mxu0 0
    %684 = vmatpush1.bf16.xpose.msra.mxu0 0
    %685 = vmatprep.subr.bf16.mxu0 0
    %686 = vmatpush1.bf16.xpose.msra.mxu0 0
    %687 = vmatprep.subr.bf16.mxu0 0
    %688 = vmatpush1.bf16.xpose.msra.mxu0 0
    %689 = vmatprep.subr.bf16.mxu0 0
    %690 = vmatpush1.bf16.xpose.msra.mxu0 0
    %691 = vmatprep.subr.bf16.mxu0 0
    %692 = vmatpush1.bf16.xpose.msra.mxu0 0
    %693 = vmatprep.subr.bf16.mxu0 0
    %694 = vmatpush1.bf16.xpose.msra.mxu0 0
    %695 = vmatprep.subr.bf16.mxu0 0
    %696 = vmatpush1.bf16.xpose.msra.mxu0 %v582
    %697 = vmatprep.subr.bf16.mxu0 0
    %698 = vmatpush2.bf16.xpose.msra.mxu0 0
    %699 = vmatprep.subr.bf16.mxu0 0
    %700 = vmatpush2.bf16.xpose.msra.mxu0 0
    %701 = vmatprep.subr.bf16.mxu0 0
    %702 = vmatpush2.bf16.xpose.msra.mxu0 0
    %703 = vmatprep.subr.bf16.mxu0 0
    %704 = vmatpush2.bf16.xpose.msra.mxu0 0
    %705 = vmatprep.subr.bf16.mxu0 0
    %706 = vmatpush2.bf16.xpose.msra.mxu0 0
    %707 = vmatprep.subr.bf16.mxu0 0
    %708 = vmatpush2.bf16.xpose.msra.mxu0 0
    %709 = vmatprep.subr.bf16.mxu0 0
    %710 = vmatpush2.bf16.xpose.msra.mxu0 0
    %711 = vmatprep.subr.bf16.mxu0 0
    %712 = vmatpush2.bf16.xpose.msra.mxu0 0
    %713 = vmatprep.mubr.bf16.mxu0 0
    %714 = vmatmul.mubr.bf16.gmra.mxu0 %v671
    %v715 = vpop.f32.mrf.mxu0
    %v716 = vadd.f32 %v679, %v715
    %v717 = vpop.f32.mrf.mxu0
    %v718 = vpop.f32.mrf.mxu0
    %v719 = vpop.f32.mrf.mxu0
    %720 = vdwg.mxu0
    %v721 = vsel %vm195, %v716, -inf
    %722 = vmax.xlane.f32.xlu0 %v721
    %v723 = vpop.xlane.xlu0 %722
    %v724 = vsub.f32 %v716, %v723
    %v725 = vmul.f32 %v724, 1.442695
    %v726 = vpow.pop %v725
    %v727 = vsel %vm195, %v726, 0.0
    %728 = vadd.xlane.f32.xlu0 %v727
    %v729 = vpop.xlane.xlu0 %728
    %v730 = vrcp.pop %v729
    %v731 = vmul.f32 %v726, %v730
    %v732 = vpack.c.bf16 %v731, %v731
    %v734 = vsel %vm195, %v732, 0
    %v737 = vsel %vm199, %v582, 0
    %739 = vmatprep.subr.bf16.mxu0 0
    %740 = vmatpush1.bf16.msra.mxu0 0
    %741 = vmatprep.subr.bf16.mxu0 0
    %742 = vmatpush1.bf16.msra.mxu0 0
    %743 = vmatprep.subr.bf16.mxu0 0
    %744 = vmatpush1.bf16.msra.mxu0 0
    %745 = vmatprep.subr.bf16.mxu0 0
    %746 = vmatpush1.bf16.msra.mxu0 0
    %747 = vmatprep.subr.bf16.mxu0 0
    %748 = vmatpush1.bf16.msra.mxu0 0
    %749 = vmatprep.subr.bf16.mxu0 0
    %750 = vmatpush1.bf16.msra.mxu0 0
    %751 = vmatprep.subr.bf16.mxu0 0
    %752 = vmatpush1.bf16.msra.mxu0 0
    %753 = vmatprep.subr.bf16.mxu0 0
    %754 = vmatpush1.bf16.msra.mxu0 %v737
    %755 = vmatprep.subr.bf16.mxu0 0
    %756 = vmatpush2.bf16.msra.mxu0 0
    %757 = vmatprep.subr.bf16.mxu0 0
    %758 = vmatpush2.bf16.msra.mxu0 0
    %759 = vmatprep.subr.bf16.mxu0 0
    %760 = vmatpush2.bf16.msra.mxu0 0
    %761 = vmatprep.subr.bf16.mxu0 0
    %762 = vmatpush2.bf16.msra.mxu0 0
    %763 = vmatprep.subr.bf16.mxu0 0
    %764 = vmatpush2.bf16.msra.mxu0 0
    %765 = vmatprep.subr.bf16.mxu0 0
    %766 = vmatpush2.bf16.msra.mxu0 0
    %767 = vmatprep.subr.bf16.mxu0 0
    %768 = vmatpush2.bf16.msra.mxu0 0
    %769 = vmatprep.subr.bf16.mxu0 0
    %770 = vmatpush2.bf16.msra.mxu0 0
    %771 = vmatprep.mubr.bf16.mxu0 0
    %772 = vmatmul.mubr.bf16.gmra.mxu0 %v734
    %v773 = vpop.f32.mrf.mxu0
    %v774 = vadd.f32 0.0, %v773
    %v775 = vpop.f32.mrf.mxu0
    %v776 = vpop.f32.mrf.mxu0
    %v777 = vpop.f32.mrf.mxu0
    %778 = vdwg.mxu0
    %v779 = vld [vmem:[%s3] sm:$0xff]
    %781 = vset.pattern.permute.xlu0 0
    %782 = vperm.xlu0 %781, %v779
    %v783 = vpop.permute.xlu0 %782
    %v785 = vmul.f32 %v774, %v783
    %v787 = vlaneseq
    %v788 = vshrl.u32 %v787, 7
    %v789 = vsub.s32 0, %v788
    %v790 = vrot.slane %v64, %v789
    %v792 = vadd.f32 %v785, %v790
    %793 = vst [vmem:[#allocation7] sm:$0xff] %v792
    %794 = vst [vmem:[#allocation7 + $0x8] sm:$0xff] %v581
    %s795 = scalar_lea.vmem %s1, 4
    %v796 = vld [vmem:[%s795] sm:$0xf]
    %v798 = vsel %vm195, %v796, 0
    %800 = vmatprep.subr.bf16.mxu0 0
    %801 = vmatpush1.bf16.msra.mxu0 0
    %802 = vmatprep.subr.bf16.mxu0 0
    %803 = vmatpush1.bf16.msra.mxu0 0
    %804 = vmatprep.subr.bf16.mxu0 0
    %805 = vmatpush1.bf16.msra.mxu0 0
    %806 = vmatprep.subr.bf16.mxu0 0
    %807 = vmatpush1.bf16.msra.mxu0 0
    %808 = vmatprep.subr.bf16.mxu0 0
    %809 = vmatpush1.bf16.msra.mxu0 0
    %810 = vmatprep.subr.bf16.mxu0 0
    %811 = vmatpush1.bf16.msra.mxu0 0
    %812 = vmatprep.subr.bf16.mxu0 0
    %813 = vmatpush1.bf16.msra.mxu0 0
    %814 = vmatprep.subr.bf16.mxu0 0
    %815 = vmatpush1.bf16.msra.mxu0 %v201
    %816 = vmatprep.subr.bf16.mxu0 0
    %817 = vmatpush2.bf16.msra.mxu0 0
    %818 = vmatprep.subr.bf16.mxu0 0
    %819 = vmatpush2.bf16.msra.mxu0 0
    %820 = vmatprep.subr.bf16.mxu0 0
    %821 = vmatpush2.bf16.msra.mxu0 0
    %822 = vmatprep.subr.bf16.mxu0 0
    %823 = vmatpush2.bf16.msra.mxu0 0
    %824 = vmatprep.subr.bf16.mxu0 0
    %825 = vmatpush2.bf16.msra.mxu0 0
    %826 = vmatprep.subr.bf16.mxu0 0
    %827 = vmatpush2.bf16.msra.mxu0 0
    %828 = vmatprep.subr.bf16.mxu0 0
    %829 = vmatpush2.bf16.msra.mxu0 0
    %830 = vmatprep.subr.bf16.mxu0 0
    %831 = vmatpush2.bf16.msra.mxu0 0
    %832 = vmatprep.mubr.bf16.mxu0 0
    %833 = vmatmul.mubr.bf16.gmra.mxu0 %v798
    %v834 = vpop.f32.mrf.mxu0
    %v835 = vadd.f32 0.0, %v834
    %v836 = vpop.f32.mrf.mxu0
    %v837 = vpop.f32.mrf.mxu0
    %v838 = vpop.f32.mrf.mxu0
    %839 = vdwg.mxu0
    %v840 = vmax.f32 %v835, 0.0
    %841 = vadd.xlane.f32.xlu0 %v840
    %v842 = vpop.xlane.xlu0 %841
    %v843 = vmul.f32 %v842, 0.03125
    %v844 = vsub.f32 %v840, %v843
    %v845 = vmul.f32 %v844, %v844
    %846 = vadd.xlane.f32.xlu0 %v845
    %v847 = vpop.xlane.xlu0 %846
    %v848 = vmul.f32 %v843, 96.0
    %v849 = vmul.f32 %v848, %v843
    %v850 = vsub.f32 %v847, %v849
    %v851 = vmul.f32 %v850, 0.03125
    %v852 = vadd.f32 %v851, 1e-05
    %v853 = vrsqrt.pop %v852
    %v854 = vmul.f32 %v844, %v853
    %v855 = vmul.f32 %v854, %v262
    %v856 = vadd.f32 %v855, %v269
    %v857 = vadd.f32 %v856, %v102
    %v858 = vpack.c.bf16 %v857, %v857
    %859 = vmatprep.subr.bf16.mxu0 0
    %860 = vmatpush1.bf16.msra.mxu0 %v145
    %861 = vmatprep.subr.bf16.mxu0 0
    %862 = vmatpush1.bf16.msra.mxu0 %v144
    %863 = vmatprep.subr.bf16.mxu0 0
    %864 = vmatpush1.bf16.msra.mxu0 %v143
    %865 = vmatprep.subr.bf16.mxu0 0
    %866 = vmatpush1.bf16.msra.mxu0 %v142
    %867 = vmatprep.subr.bf16.mxu0 0
    %868 = vmatpush1.bf16.msra.mxu0 %v141
    %869 = vmatprep.subr.bf16.mxu0 0
    %870 = vmatpush1.bf16.msra.mxu0 %v140
    %871 = vmatprep.subr.bf16.mxu0 0
    %872 = vmatpush1.bf16.msra.mxu0 %v139
    %873 = vmatprep.subr.bf16.mxu0 0
    %874 = vmatpush1.bf16.msra.mxu0 %v138
    %875 = vmatprep.subr.bf16.mxu0 0
    %876 = vmatpush2.bf16.msra.mxu0 0
    %877 = vmatprep.subr.bf16.mxu0 0
    %878 = vmatpush2.bf16.msra.mxu0 0
    %879 = vmatprep.subr.bf16.mxu0 0
    %880 = vmatpush2.bf16.msra.mxu0 0
    %881 = vmatprep.subr.bf16.mxu0 0
    %882 = vmatpush2.bf16.msra.mxu0 0
    %883 = vmatprep.subr.bf16.mxu0 0
    %884 = vmatpush2.bf16.msra.mxu0 0
    %885 = vmatprep.subr.bf16.mxu0 0
    %886 = vmatpush2.bf16.msra.mxu0 0
    %887 = vmatprep.subr.bf16.mxu0 0
    %888 = vmatpush2.bf16.msra.mxu0 0
    %889 = vmatprep.subr.bf16.mxu0 0
    %890 = vmatpush2.bf16.msra.mxu0 0
    %891 = vmatprep.mubr.bf16.mxu0 0
    %892 = vmatmul.mubr.bf16.gmra.mxu0 %v858
    %v893 = vpop.f32.mrf.mxu0
    %v894 = vadd.f32 0.0, %v893
    %v895 = vpop.f32.mrf.mxu0
    %v896 = vpop.f32.mrf.mxu0
    %v897 = vpop.f32.mrf.mxu0
    %898 = vdwg.mxu0
    %v899 = vpack.c.bf16 %v894, %v894
    %v901 = vsel %vm199, %v899, 0
    %903 = vmatprep.subr.bf16.mxu0 0
    %904 = vmatpush1.bf16.msra.mxu0 0
    %905 = vmatprep.subr.bf16.mxu0 0
    %906 = vmatpush1.bf16.msra.mxu0 0
    %907 = vmatprep.subr.bf16.mxu0 0
    %908 = vmatpush1.bf16.msra.mxu0 0
    %909 = vmatprep.subr.bf16.mxu0 0
    %910 = vmatpush1.bf16.msra.mxu0 0
    %911 = vmatprep.subr.bf16.mxu0 0
    %912 = vmatpush1.bf16.msra.mxu0 0
    %913 = vmatprep.subr.bf16.mxu0 0
    %914 = vmatpush1.bf16.msra.mxu0 0
    %915 = vmatprep.subr.bf16.mxu0 0
    %916 = vmatpush1.bf16.msra.mxu0 0
    %917 = vmatprep.subr.bf16.mxu0 0
    %918 = vmatpush1.bf16.msra.mxu0 %v901
    %919 = vmatprep.subr.bf16.mxu0 0
    %920 = vmatpush2.bf16.msra.mxu0 0
    %921 = vmatprep.subr.bf16.mxu0 0
    %922 = vmatpush2.bf16.msra.mxu0 0
    %923 = vmatprep.subr.bf16.mxu0 0
    %924 = vmatpush2.bf16.msra.mxu0 0
    %925 = vmatprep.subr.bf16.mxu0 0
    %926 = vmatpush2.bf16.msra.mxu0 0
    %927 = vmatprep.subr.bf16.mxu0 0
    %928 = vmatpush2.bf16.msra.mxu0 0
    %929 = vmatprep.subr.bf16.mxu0 0
    %930 = vmatpush2.bf16.msra.mxu0 0
    %931 = vmatprep.subr.bf16.mxu0 0
    %932 = vmatpush2.bf16.msra.mxu0 0
    %933 = vmatprep.subr.bf16.mxu0 0
    %934 = vmatpush2.bf16.msra.mxu0 0
    %935 = vmatprep.mubr.bf16.mxu0 0
    %936 = vmatmul.mubr.bf16.gmra.mxu0 %v798
    %v937 = vpop.f32.mrf.mxu0
    %v938 = vadd.f32 0.0, %v937
    %v939 = vpop.f32.mrf.mxu0
    %v940 = vpop.f32.mrf.mxu0
    %v941 = vpop.f32.mrf.mxu0
    %942 = vdwg.mxu0
    %v943 = vmax.f32 %v938, 0.0
    %944 = vadd.xlane.f32.xlu0 %v943
    %v945 = vpop.xlane.xlu0 %944
    %v946 = vmul.f32 %v945, 0.03125
    %v947 = vsub.f32 %v943, %v946
    %v948 = vmul.f32 %v947, %v947
    %949 = vadd.xlane.f32.xlu0 %v948
    %v950 = vpop.xlane.xlu0 %949
    %v951 = vmul.f32 %v946, 96.0
    %v952 = vmul.f32 %v951, %v946
    %v953 = vsub.f32 %v950, %v952
    %v954 = vmul.f32 %v953, 0.03125
    %v955 = vadd.f32 %v954, 1e-05
    %v956 = vrsqrt.pop %v955
    %v957 = vmul.f32 %v947, %v956
    %v958 = vmul.f32 %v957, %v262
    %v959 = vadd.f32 %v958, %v269
    %v960 = vadd.f32 %v959, %v857
    %v961 = vpack.c.bf16 %v960, %v960
    %962 = vmatprep.subr.bf16.mxu0 0
    %963 = vmatpush1.bf16.msra.mxu0 %v145
    %964 = vmatprep.subr.bf16.mxu0 0
    %965 = vmatpush1.bf16.msra.mxu0 %v144
    %966 = vmatprep.subr.bf16.mxu0 0
    %967 = vmatpush1.bf16.msra.mxu0 %v143
    %968 = vmatprep.subr.bf16.mxu0 0
    %969 = vmatpush1.bf16.msra.mxu0 %v142
    %970 = vmatprep.subr.bf16.mxu0 0
    %971 = vmatpush1.bf16.msra.mxu0 %v141
    %972 = vmatprep.subr.bf16.mxu0 0
    %973 = vmatpush1.bf16.msra.mxu0 %v140
    %974 = vmatprep.subr.bf16.mxu0 0
    %975 = vmatpush1.bf16.msra.mxu0 %v139
    %976 = vmatprep.subr.bf16.mxu0 0
    %977 = vmatpush1.bf16.msra.mxu0 %v138
    %978 = vmatprep.subr.bf16.mxu0 0
    %979 = vmatpush2.bf16.msra.mxu0 0
    %980 = vmatprep.subr.bf16.mxu0 0
    %981 = vmatpush2.bf16.msra.mxu0 0
    %982 = vmatprep.subr.bf16.mxu0 0
    %983 = vmatpush2.bf16.msra.mxu0 0
    %984 = vmatprep.subr.bf16.mxu0 0
    %985 = vmatpush2.bf16.msra.mxu0 0
    %986 = vmatprep.subr.bf16.mxu0 0
    %987 = vmatpush2.bf16.msra.mxu0 0
    %988 = vmatprep.subr.bf16.mxu0 0
    %989 = vmatpush2.bf16.msra.mxu0 0
    %990 = vmatprep.subr.bf16.mxu0 0
    %991 = vmatpush2.bf16.msra.mxu0 0
    %992 = vmatprep.subr.bf16.mxu0 0
    %993 = vmatpush2.bf16.msra.mxu0 0
    %994 = vmatprep.mubr.bf16.mxu0 0
    %995 = vmatmul.mubr.bf16.gmra.mxu0 %v961
    %v996 = vpop.f32.mrf.mxu0
    %v997 = vadd.f32 0.0, %v996
    %v998 = vpop.f32.mrf.mxu0
    %v999 = vpop.f32.mrf.mxu0
    %v1000 = vpop.f32.mrf.mxu0
    %1001 = vdwg.mxu0
    %v1002 = vpack.c.bf16 %v997, %v997
    %v1004 = vsel %vm199, %v1002, 0
    %1006 = vmatprep.subr.bf16.mxu0 0
    %1007 = vmatpush1.bf16.msra.mxu0 0
    %1008 = vmatprep.subr.bf16.mxu0 0
    %1009 = vmatpush1.bf16.msra.mxu0 0
    %1010 = vmatprep.subr.bf16.mxu0 0
    %1011 = vmatpush1.bf16.msra.mxu0 0
    %1012 = vmatprep.subr.bf16.mxu0 0
    %1013 = vmatpush1.bf16.msra.mxu0 0
    %1014 = vmatprep.subr.bf16.mxu0 0
    %1015 = vmatpush1.bf16.msra.mxu0 0
    %1016 = vmatprep.subr.bf16.mxu0 0
    %1017 = vmatpush1.bf16.msra.mxu0 0
    %1018 = vmatprep.subr.bf16.mxu0 0
    %1019 = vmatpush1.bf16.msra.mxu0 0
    %1020 = vmatprep.subr.bf16.mxu0 0
    %1021 = vmatpush1.bf16.msra.mxu0 %v1004
    %1022 = vmatprep.subr.bf16.mxu0 0
    %1023 = vmatpush2.bf16.msra.mxu0 0
    %1024 = vmatprep.subr.bf16.mxu0 0
    %1025 = vmatpush2.bf16.msra.mxu0 0
    %1026 = vmatprep.subr.bf16.mxu0 0
    %1027 = vmatpush2.bf16.msra.mxu0 0
    %1028 = vmatprep.subr.bf16.mxu0 0
    %1029 = vmatpush2.bf16.msra.mxu0 0
    %1030 = vmatprep.subr.bf16.mxu0 0
    %1031 = vmatpush2.bf16.msra.mxu0 0
    %1032 = vmatprep.subr.bf16.mxu0 0
    %1033 = vmatpush2.bf16.msra.mxu0 0
    %1034 = vmatprep.subr.bf16.mxu0 0
    %1035 = vmatpush2.bf16.msra.mxu0 0
    %1036 = vmatprep.subr.bf16.mxu0 0
    %1037 = vmatpush2.bf16.msra.mxu0 0
    %1038 = vmatprep.mubr.bf16.mxu0 0
    %1039 = vmatmul.mubr.bf16.gmra.mxu0 %v798
    %v1040 = vpop.f32.mrf.mxu0
    %v1041 = vadd.f32 0.0, %v1040
    %v1042 = vpop.f32.mrf.mxu0
    %v1043 = vpop.f32.mrf.mxu0
    %v1044 = vpop.f32.mrf.mxu0
    %1045 = vdwg.mxu0
    %v1046 = vmax.f32 %v1041, 0.0
    %1047 = vadd.xlane.f32.xlu0 %v1046
    %v1048 = vpop.xlane.xlu0 %1047
    %v1049 = vmul.f32 %v1048, 0.03125
    %v1050 = vsub.f32 %v1046, %v1049
    %v1051 = vmul.f32 %v1050, %v1050
    %1052 = vadd.xlane.f32.xlu0 %v1051
    %v1053 = vpop.xlane.xlu0 %1052
    %v1054 = vmul.f32 %v1049, 96.0
    %v1055 = vmul.f32 %v1054, %v1049
    %v1056 = vsub.f32 %v1053, %v1055
    %v1057 = vmul.f32 %v1056, 0.03125
    %v1058 = vadd.f32 %v1057, 1e-05
    %v1059 = vrsqrt.pop %v1058
    %v1060 = vmul.f32 %v1050, %v1059
    %v1061 = vmul.f32 %v1060, %v262
    %v1062 = vadd.f32 %v1061, %v269
    %v1063 = vadd.f32 %v1062, %v960
    %v1064 = vpack.c.bf16 %v1063, %v1063
    %1065 = vmatprep.subr.bf16.mxu0 0
    %1066 = vmatpush1.bf16.msra.mxu0 %v145
    %1067 = vmatprep.subr.bf16.mxu0 0
    %1068 = vmatpush1.bf16.msra.mxu0 %v144
    %1069 = vmatprep.subr.bf16.mxu0 0
    %1070 = vmatpush1.bf16.msra.mxu0 %v143
    %1071 = vmatprep.subr.bf16.mxu0 0
    %1072 = vmatpush1.bf16.msra.mxu0 %v142
    %1073 = vmatprep.subr.bf16.mxu0 0
    %1074 = vmatpush1.bf16.msra.mxu0 %v141
    %1075 = vmatprep.subr.bf16.mxu0 0
    %1076 = vmatpush1.bf16.msra.mxu0 %v140
    %1077 = vmatprep.subr.bf16.mxu0 0
    %1078 = vmatpush1.bf16.msra.mxu0 %v139
    %1079 = vmatprep.subr.bf16.mxu0 0
    %1080 = vmatpush1.bf16.msra.mxu0 %v138
    %1081 = vmatprep.subr.bf16.mxu0 0
    %1082 = vmatpush2.bf16.msra.mxu0 0
    %1083 = vmatprep.subr.bf16.mxu0 0
    %1084 = vmatpush2.bf16.msra.mxu0 0
    %1085 = vmatprep.subr.bf16.mxu0 0
    %1086 = vmatpush2.bf16.msra.mxu0 0
    %1087 = vmatprep.subr.bf16.mxu0 0
    %1088 = vmatpush2.bf16.msra.mxu0 0
    %1089 = vmatprep.subr.bf16.mxu0 0
    %1090 = vmatpush2.bf16.msra.mxu0 0
    %1091 = vmatprep.subr.bf16.mxu0 0
    %1092 = vmatpush2.bf16.msra.mxu0 0
    %1093 = vmatprep.subr.bf16.mxu0 0
    %1094 = vmatpush2.bf16.msra.mxu0 0
    %1095 = vmatprep.subr.bf16.mxu0 0
    %1096 = vmatpush2.bf16.msra.mxu0 0
    %1097 = vmatprep.mubr.bf16.mxu0 0
    %1098 = vmatmul.mubr.bf16.gmra.mxu0 %v1064
    %v1099 = vpop.f32.mrf.mxu0
    %v1100 = vadd.f32 0.0, %v1099
    %v1101 = vpop.f32.mrf.mxu0
    %v1102 = vpop.f32.mrf.mxu0
    %v1103 = vpop.f32.mrf.mxu0
    %1104 = vdwg.mxu0
    %v1105 = vpack.c.bf16 %v1100, %v1100
    %v1107 = vsel %vm199, %v1105, 0
    %1109 = vmatprep.subr.bf16.mxu0 0
    %1110 = vmatpush1.bf16.msra.mxu0 0
    %1111 = vmatprep.subr.bf16.mxu0 0
    %1112 = vmatpush1.bf16.msra.mxu0 0
    %1113 = vmatprep.subr.bf16.mxu0 0
    %1114 = vmatpush1.bf16.msra.mxu0 0
    %1115 = vmatprep.subr.bf16.mxu0 0
    %1116 = vmatpush1.bf16.msra.mxu0 0
    %1117 = vmatprep.subr.bf16.mxu0 0
    %1118 = vmatpush1.bf16.msra.mxu0 0
    %1119 = vmatprep.subr.bf16.mxu0 0
    %1120 = vmatpush1.bf16.msra.mxu0 0
    %1121 = vmatprep.subr.bf16.mxu0 0
    %1122 = vmatpush1.bf16.msra.mxu0 0
    %1123 = vmatprep.subr.bf16.mxu0 0
    %1124 = vmatpush1.bf16.msra.mxu0 %v1107
    %1125 = vmatprep.subr.bf16.mxu0 0
    %1126 = vmatpush2.bf16.msra.mxu0 0
    %1127 = vmatprep.subr.bf16.mxu0 0
    %1128 = vmatpush2.bf16.msra.mxu0 0
    %1129 = vmatprep.subr.bf16.mxu0 0
    %1130 = vmatpush2.bf16.msra.mxu0 0
    %1131 = vmatprep.subr.bf16.mxu0 0
    %1132 = vmatpush2.bf16.msra.mxu0 0
    %1133 = vmatprep.subr.bf16.mxu0 0
    %1134 = vmatpush2.bf16.msra.mxu0 0
    %1135 = vmatprep.subr.bf16.mxu0 0
    %1136 = vmatpush2.bf16.msra.mxu0 0
    %1137 = vmatprep.subr.bf16.mxu0 0
    %1138 = vmatpush2.bf16.msra.mxu0 0
    %1139 = vmatprep.subr.bf16.mxu0 0
    %1140 = vmatpush2.bf16.msra.mxu0 0
    %1141 = vmatprep.mubr.bf16.mxu0 0
    %1142 = vmatmul.mubr.bf16.gmra.mxu0 %v798
    %v1143 = vpop.f32.mrf.mxu0
    %v1144 = vadd.f32 0.0, %v1143
    %v1145 = vpop.f32.mrf.mxu0
    %v1146 = vpop.f32.mrf.mxu0
    %v1147 = vpop.f32.mrf.mxu0
    %1148 = vdwg.mxu0
    %v1149 = vmax.f32 %v1144, 0.0
    %1150 = vadd.xlane.f32.xlu0 %v1149
    %v1151 = vpop.xlane.xlu0 %1150
    %v1152 = vmul.f32 %v1151, 0.03125
    %v1153 = vsub.f32 %v1149, %v1152
    %v1154 = vmul.f32 %v1153, %v1153
    %1155 = vadd.xlane.f32.xlu0 %v1154
    %v1156 = vpop.xlane.xlu0 %1155
    %v1157 = vmul.f32 %v1152, 96.0
    %v1158 = vmul.f32 %v1157, %v1152
    %v1159 = vsub.f32 %v1156, %v1158
    %v1160 = vmul.f32 %v1159, 0.03125
    %v1161 = vadd.f32 %v1160, 1e-05
    %v1162 = vrsqrt.pop %v1161
    %v1163 = vmul.f32 %v1153, %v1162
    %v1164 = vmul.f32 %v1163, %v262
    %v1165 = vadd.f32 %v1164, %v269
    %v1166 = vadd.f32 %v1165, %v1063
    %v1167 = vpack.c.bf16 %v1166, %v1166
    %1168 = vmatprep.subr.bf16.mxu0 0
    %1169 = vmatpush1.bf16.msra.mxu0 %v622
    %1170 = vmatprep.subr.bf16.mxu0 0
    %1171 = vmatpush1.bf16.msra.mxu0 %v621
    %1172 = vmatprep.subr.bf16.mxu0 0
    %1173 = vmatpush1.bf16.msra.mxu0 %v620
    %1174 = vmatprep.subr.bf16.mxu0 0
    %1175 = vmatpush1.bf16.msra.mxu0 %v619
    %1176 = vmatprep.subr.bf16.mxu0 0
    %1177 = vmatpush1.bf16.msra.mxu0 %v618
    %1178 = vmatprep.subr.bf16.mxu0 0
    %1179 = vmatpush1.bf16.msra.mxu0 %v617
    %1180 = vmatprep.subr.bf16.mxu0 0
    %1181 = vmatpush1.bf16.msra.mxu0 %v616
    %1182 = vmatprep.subr.bf16.mxu0 0
    %1183 = vmatpush1.bf16.msra.mxu0 %v615
    %1184 = vmatprep.subr.bf16.mxu0 0
    %1185 = vmatpush2.bf16.msra.mxu0 0
    %1186 = vmatprep.subr.bf16.mxu0 0
    %1187 = vmatpush2.bf16.msra.mxu0 0
    %1188 = vmatprep.subr.bf16.mxu0 0
    %1189 = vmatpush2.bf16.msra.mxu0 0
    %1190 = vmatprep.subr.bf16.mxu0 0
    %1191 = vmatpush2.bf16.msra.mxu0 0
    %1192 = vmatprep.subr.bf16.mxu0 0
    %1193 = vmatpush2.bf16.msra.mxu0 0
    %1194 = vmatprep.subr.bf16.mxu0 0
    %1195 = vmatpush2.bf16.msra.mxu0 0
    %1196 = vmatprep.subr.bf16.mxu0 0
    %1197 = vmatpush2.bf16.msra.mxu0 0
    %1198 = vmatprep.subr.bf16.mxu0 0
    %1199 = vmatpush2.bf16.msra.mxu0 0
    %1200 = vmatprep.mubr.bf16.mxu0 0
    %1201 = vmatmul.mubr.bf16.gmra.mxu0 %v1167
    %v1202 = vpop.f32.mrf.mxu0
    %v1203 = vadd.f32 0.0, %v1202
    %v1204 = vpop.f32.mrf.mxu0
    %v1205 = vpop.f32.mrf.mxu0
    %v1206 = vpop.f32.mrf.mxu0
    %1207 = vdwg.mxu0
    %v1208 = vpack.c.bf16 %v1203, %v1203
    %s1209 = scalar_lea.vmem %s2, 1
    %v1210 = vld [vmem:[%s1209] sm:$0x1]
    %v1211 = vsub.f32 1.0, %v1210
    %v1212 = vmul.f32 %v1211, -1e+20
    %v1214 = vlaneseq
    %v1215 = vshrl.u32 %v1214, 7
    %v1216 = vsub.s32 0, %v1215
    %v1217 = vrot.slane %v1212, %v1216
    %1219 = vmatprep.subr.bf16.mxu0 0
    %1220 = vmatpush1.bf16.xpose.msra.mxu0 0
    %1221 = vmatprep.subr.bf16.mxu0 0
    %1222 = vmatpush1.bf16.xpose.msra.mxu0 0
    %1223 = vmatprep.subr.bf16.mxu0 0
    %1224 = vmatpush1.bf16.xpose.msra.mxu0 0
    %1225 = vmatprep.subr.bf16.mxu0 0
    %1226 = vmatpush1.bf16.xpose.msra.mxu0 0
    %1227 = vmatprep.subr.bf16.mxu0 0
    %1228 = vmatpush1.bf16.xpose.msra.mxu0 0
    %1229 = vmatprep.subr.bf16.mxu0 0
    %1230 = vmatpush1.bf16.xpose.msra.mxu0 0
    %1231 = vmatprep.subr.bf16.mxu0 0
    %1232 = vmatpush1.bf16.xpose.msra.mxu0 0
    %1233 = vmatprep.subr.bf16.mxu0 0
    %1234 = vmatpush1.bf16.xpose.msra.mxu0 %v1167
    %1235 = vmatprep.subr.bf16.mxu0 0
    %1236 = vmatpush2.bf16.xpose.msra.mxu0 0
    %1237 = vmatprep.subr.bf16.mxu0 0
    %1238 = vmatpush2.bf16.xpose.msra.mxu0 0
    %1239 = vmatprep.subr.bf16.mxu0 0
    %1240 = vmatpush2.bf16.xpose.msra.mxu0 0
    %1241 = vmatprep.subr.bf16.mxu0 0
    %1242 = vmatpush2.bf16.xpose.msra.mxu0 0
    %1243 = vmatprep.subr.bf16.mxu0 0
    %1244 = vmatpush2.bf16.xpose.msra.mxu0 0
    %1245 = vmatprep.subr.bf16.mxu0 0
    %1246 = vmatpush2.bf16.xpose.msra.mxu0 0
    %1247 = vmatprep.subr.bf16.mxu0 0
    %1248 = vmatpush2.bf16.xpose.msra.mxu0 0
    %1249 = vmatprep.subr.bf16.mxu0 0
    %1250 = vmatpush2.bf16.xpose.msra.mxu0 0
    %1251 = vmatprep.mubr.bf16.mxu0 0
    %1252 = vmatmul.mubr.bf16.gmra.mxu0 %v1208
    %v1253 = vpop.f32.mrf.mxu0
    %v1254 = vadd.f32 %v1217, %v1253
    %v1255 = vpop.f32.mrf.mxu0
    %v1256 = vpop.f32.mrf.mxu0
    %v1257 = vpop.f32.mrf.mxu0
    %1258 = vdwg.mxu0
    %v1259 = vsel %vm195, %v1254, -inf
    %1260 = vmax.xlane.f32.xlu0 %v1259
    %v1261 = vpop.xlane.xlu0 %1260
    %v1262 = vsub.f32 %v1254, %v1261
    %v1263 = vmul.f32 %v1262, 1.442695
    %v1264 = vpow.pop %v1263
    %v1265 = vsel %vm195, %v1264, 0.0
    %1266 = vadd.xlane.f32.xlu0 %v1265
    %v1267 = vpop.xlane.xlu0 %1266
    %v1268 = vrcp.pop %v1267
    %v1269 = vmul.f32 %v1264, %v1268
    %v1270 = vpack.c.bf16 %v1269, %v1269
    %v1272 = vsel %vm195, %v1270, 0
    %v1275 = vsel %vm199, %v1167, 0
    %1277 = vmatprep.subr.bf16.mxu0 0
    %1278 = vmatpush1.bf16.msra.mxu0 0
    %1279 = vmatprep.subr.bf16.mxu0 0
    %1280 = vmatpush1.bf16.msra.mxu0 0
    %1281 = vmatprep.subr.bf16.mxu0 0
    %1282 = vmatpush1.bf16.msra.mxu0 0
    %1283 = vmatprep.subr.bf16.mxu0 0
    %1284 = vmatpush1.bf16.msra.mxu0 0
    %1285 = vmatprep.subr.bf16.mxu0 0
    %1286 = vmatpush1.bf16.msra.mxu0 0
    %1287 = vmatprep.subr.bf16.mxu0 0
    %1288 = vmatpush1.bf16.msra.mxu0 0
    %1289 = vmatprep.subr.bf16.mxu0 0
    %1290 = vmatpush1.bf16.msra.mxu0 0
    %1291 = vmatprep.subr.bf16.mxu0 0
    %1292 = vmatpush1.bf16.msra.mxu0 %v1275
    %1293 = vmatprep.subr.bf16.mxu0 0
    %1294 = vmatpush2.bf16.msra.mxu0 0
    %1295 = vmatprep.subr.bf16.mxu0 0
    %1296 = vmatpush2.bf16.msra.mxu0 0
    %1297 = vmatprep.subr.bf16.mxu0 0
    %1298 = vmatpush2.bf16.msra.mxu0 0
    %1299 = vmatprep.subr.bf16.mxu0 0
    %1300 = vmatpush2.bf16.msra.mxu0 0
    %1301 = vmatprep.subr.bf16.mxu0 0
    %1302 = vmatpush2.bf16.msra.mxu0 0
    %1303 = vmatprep.subr.bf16.mxu0 0
    %1304 = vmatpush2.bf16.msra.mxu0 0
    %1305 = vmatprep.subr.bf16.mxu0 0
    %1306 = vmatpush2.bf16.msra.mxu0 0
    %1307 = vmatprep.subr.bf16.mxu0 0
    %1308 = vmatpush2.bf16.msra.mxu0 0
    %1309 = vmatprep.mubr.bf16.mxu0 0
    %1310 = vmatmul.mubr.bf16.gmra.mxu0 %v1272
    %v1311 = vpop.f32.mrf.mxu0
    %v1312 = vadd.f32 0.0, %v1311
    %v1313 = vpop.f32.mrf.mxu0
    %v1314 = vpop.f32.mrf.mxu0
    %v1315 = vpop.f32.mrf.mxu0
    %1316 = vdwg.mxu0
    %s1317 = scalar_lea.vmem %s3, 8
    %v1318 = vld [vmem:[%s1317] sm:$0xff]
    %1320 = vset.pattern.permute.xlu0 0
    %1321 = vperm.xlu0 %1320, %v1318
    %v1322 = vpop.permute.xlu0 %1321
    %v1324 = vmul.f32 %v1312, %v1322
    %v1325 = vadd.f32 %v1324, %v790
    %s1326 = scalar_lea.vmem [#allocation7], 16
    %1327 = vst [vmem:[%s1326] sm:$0xff] %v1325
    %1328 = vst [vmem:[%s1326 + $0x8] sm:$0xff] %v1166
    // Predicated region
    $region46: #{tpu_custom_call.1} parent=1 // pred_check
      _
    $region47: #{tpu_custom_call.1} parent=1 // pred_check_branch
      %1330 = sbr.rel (0) target = $region49
    $region48: #{tpu_custom_call.1} parent=1 // pred_region
      %s1332 = ssub.s32 512, 512
      %1333 = vsyncadd [#allocation4], %s1332
      %s1334 = sshll.u32 [#allocation7], 4
      %s1335 = int_to_ptr.vmem [resolvable:$true] %s1334
      %1340 = dma.vmem_to_hbm [thread:$0]  %s1335, 512, %s9, [#allocation4], 256, 256, 16
    $region49: #{tpu_custom_call.1} parent=1 // pred_fallthru
      _
    // Predicated region
    $region50: #{tpu_custom_call.1} parent=1 // pred_check
      _
    $region51: #{tpu_custom_call.1} parent=1 // pred_check_branch
      %1342 = sbr.rel (0) target = $region53
    $region52: #{tpu_custom_call.1} parent=1 // pred_region
      %1343 = dma.done [#allocation4], 512
    $region53: #{tpu_custom_call.1} parent=1 // pred_fallthru
      _
    %1344 = vsyncpa [#allocation3], 1
    %1345 = vsyncpa [#allocation6], 1
    %1346 = vsyncpa [#allocation4], 1

</llo_original>
